<compile_context>
chip_gen: v7x
topology: tpu7x:2x2x1
jax: 0.10.0
libtpu: 0.0.40
codegen_flags: <defaults>
</compile_context>

<pallas_src>
import jax
import jax.numpy as jnp
from jax import lax
from jax.experimental import pallas as pl
from jax.experimental.pallas import tpu as pltpu

EPS = 1e-5


# --------------------------------------------------------------------------------------------
# Fused kernel: 3x3 conv (9 shifted matmuls) + bias + stats + 2x2 max-pool; norm+ReLU at last tile
# --------------------------------------------------------------------------------------------
def _make_kernel(TR, W, Cin, Cp, inv_hw):
    TRp = TR // 2
    Wp = W // 2

    def kernel(x_ref, w_ref, b_ref, o_ref, rpool_sc, sum_sc, ssq_sc):
        t = pl.program_id(1)

        @pl.when(t == 0)
        def _init():
            sum_sc[...] = jnp.zeros_like(sum_sc)
            ssq_sc[...] = jnp.zeros_like(ssq_sc)

        # ---- 3x3 conv as 9 accumulated MXU matmuls over shifted views (no im2col in HBM) ----
        x = x_ref[0]                                            # (TR+2, W+2, Cin) bf16
        acc = jnp.zeros((TR * W, Cp), jnp.float32)
        for kh in range(3):
            for kw in range(3):
                patch = x[kh:kh + TR, kw:kw + W, :].reshape(TR * W, Cin)      # bf16
                acc = acc + jnp.dot(patch, w_ref[kh, kw],
                                    preferred_element_type=jnp.float32)
        y = acc + b_ref[...]                                    # (TR*W, Cp) f32

        # ---- InstanceNorm statistics (per-channel sum / sum-of-squares over all H*W) ----
        sum_sc[...] += jnp.sum(y, axis=0, keepdims=True)
        ssq_sc[...] += jnp.sum(y * y, axis=0, keepdims=True)

        # ---- fused 2x2 max-pool of the pre-norm conv output (commutes with norm + ReLU) ----
        y2 = y.reshape(TRp, 2 * W, Cp)                          # row pair -> [even row | odd row]
        rmax = jnp.maximum(y2[:, :W, :], y2[:, W:, :])          # (TRp, W, Cp) pooled over rows
        rpool_sc[...] = rmax
        pooled = jnp.maximum(rpool_sc[:, pl.ds(0, Wp, stride=2), :],   # even cols
                             rpool_sc[:, pl.ds(1, Wp, stride=2), :])   # odd cols
        o_ref[0, pl.ds(t * TRp, TRp), :, :] = pooled            # pre-norm pooled rows of this tile

        # ---- finalize: normalize + ReLU the resident pooled output once stats are complete ----
        @pl.when(t == pl.num_programs(1) - 1)
        def _finalize():
            mean = sum_sc[...] * inv_hw                                    # (1, Cp)
            var = jnp.maximum(ssq_sc[...] * inv_hw - mean * mean, 0.0)     # biased variance
            inv = lax.rsqrt(var + EPS)
            o_ref[0] = jnp.maximum((o_ref[0] - mean) * inv, 0.0)

    return kernel


def _choose_tile_rows(Hout, W, Cin, Cp, budget_bytes=4 << 20):
    """Largest even divisor of Hout whose per-step working set fits a modest VMEM budget."""
    best = 2
    for tr in range(2, Hout + 1, 2):
        if Hout % tr:
            continue
        in_tile = 2 * (tr + 2) * (W + 2) * max(Cin, 128) * 2     # double-buffered bf16 input tile
        work = (tr // 2) * W * Cp * 4                            # row-pooled f32 staging scratch
        if in_tile + work <= budget_bytes:
            best = tr
    return best


# --------------------------------------------------------------------------------------------
# Public wrapper (PyTorch NCHW in / NCHW out)
# --------------------------------------------------------------------------------------------
def conv_block_down(x_nchw, w_oihw, bias, stride=1, tile_rows=None):
    """MaxPool2d(2)(ReLU(InstanceNorm2d(Conv2d(Cin, Cout, k=3, s=1, p=1)(x))))."""
    N, Cin, H, W = x_nchw.shape
    Cout = w_oihw.shape[0]
    assert stride == 1                      # TODO(synk): general stride in the fused kernel
    assert H % 2 == 0 and W % 2 == 0 and W % 8 == 0   # TODO(synk): odd/unaligned spatial dims
    Hout, Wout = H, W
    Hp, Wp = Hout // 2, Wout // 2
    Cp = ((Cout + 127) // 128) * 128        # pad channels to a lane-dense multiple of 128

    TR = tile_rows if tile_rows is not None else _choose_tile_rows(Hout, Wout, Cin, Cp)
    assert TR % 2 == 0 and Hout % TR == 0
    T = Hout // TR

    # glue: NCHW -> NHWC, zero-pad the spatial halo, bf16 for the MXU
    # TODO(synk): drop the NCHW<->NHWC transposes if the surrounding model can live in NHWC.
    x_nhwc = jnp.transpose(x_nchw, (0, 2, 3, 1))
    xp = jnp.pad(x_nhwc, ((0, 0), (1, 1), (1, 1), (0, 0))).astype(jnp.bfloat16)
    # Row tiles with a 2-row halo (~(TR+2)/TR duplication; ~9x less HBM traffic than im2col).
    tiles = jnp.stack([xp[:, t * TR:t * TR + TR + 2] for t in range(T)], axis=1)
    tiles = tiles.reshape(N * T, TR + 2, Wout + 2, Cin)

    # weights: OIHW -> (kh, kw, Cin, Cout) padded to Cp lanes, bf16; bias stays f32
    w_k = jnp.transpose(w_oihw, (2, 3, 1, 0))
    w_k = jnp.pad(w_k, ((0, 0), (0, 0), (0, 0), (0, Cp - Cout))).astype(jnp.bfloat16)
    b_k = jnp.pad(bias, (0, Cp - Cout)).reshape(1, Cp).astype(jnp.float32)

    kernel = _make_kernel(TR, Wout, Cin, Cp, 1.0 / float(Hout * Wout))

    out = pl.pallas_call(
        kernel,
        out_shape=jax.ShapeDtypeStruct((N, Hp, Wp, Cp), jnp.float32),
        grid=(N, T),
        in_specs=[
            pl.BlockSpec((1, TR + 2, Wout + 2, Cin), lambda n, t: (n * T + t, 0, 0, 0)),
            pl.BlockSpec((3, 3, Cin, Cp), lambda n, t: (0, 0, 0, 0)),
            pl.BlockSpec((1, Cp), lambda n, t: (0, 0)),
        ],
        out_specs=pl.BlockSpec((1, Hp, Wp, Cp), lambda n, t: (n, 0, 0, 0)),
        scratch_shapes=[
            pltpu.VMEM((TR // 2, Wout, Cp), jnp.float32),   # row-pooled staging (strided col pool)
            pltpu.VMEM((1, Cp), jnp.float32),               # per-channel sum
            pltpu.VMEM((1, Cp), jnp.float32),               # per-channel sum of squares
        ],
        compiler_params=pltpu.CompilerParams(
            dimension_semantics=("parallel", "arbitrary"),
            vmem_limit_bytes=32 * 1024 * 1024,
        ),
    )(tiles, w_k, b_k)

    out = out[..., :Cout]                        # drop lane padding
    return jnp.transpose(out, (0, 3, 1, 2))      # NHWC -> NCHW (PyTorch contract)


# --------------------------------------------------------------------------------------------
# Plain JAX/XLA reference for verification
# --------------------------------------------------------------------------------------------
def conv_block_down_ref(x, w, b, stride=1):
    y = lax.conv_general_dilated(
        x, w, window_strides=(stride, stride), padding=((1, 1), (1, 1)),
        dimension_numbers=("NCHW", "OIHW", "NCHW"), precision=lax.Precision.HIGHEST)
    y = y + b[None, :, None, None]
    mean = jnp.mean(y, axis=(2, 3), keepdims=True)
    var = jnp.mean((y - mean) ** 2, axis=(2, 3), keepdims=True)   # biased, as in InstanceNorm2d
    y = (y - mean) / jnp.sqrt(var + EPS)
    y = jnp.maximum(y, 0.0)
    y = lax.reduce_window(y, -jnp.inf, lax.max, (1, 1, 2, 2), (1, 1, 2, 2), "VALID")
    return y


if __name__ == "__main__":
    key = jax.random.PRNGKey(0)

    def check(k, N, Cin, H, W, Cout, tile_rows=None):
        kx, kw, kb = jax.random.split(k, 3)
        x = jax.random.normal(kx, (N, Cin, H, W), dtype=jnp.float32)
        w = jax.random.normal(kw, (Cout, Cin, 3, 3), dtype=jnp.float32) * 0.1
        b = jax.random.normal(kb, (Cout,), dtype=jnp.float32) * 0.1

        out = jax.block_until_ready(conv_block_down(x, w, b, tile_rows=tile_rows))
        assert out.shape == (N, Cout, H // 2, W // 2), out.shape

        # Kernel feeds bf16 to the MXU (f32 accumulation / norm); compare against the f32
        # reference evaluated on bf16-rounded inputs.
        xq = x.astype(jnp.bfloat16).astype(jnp.float32)
        wq = w.astype(jnp.bfloat16).astype(jnp.float32)
        ref = jax.block_until_ready(conv_block_down_ref(xq, wq, b))
        err = float(jnp.max(jnp.abs(out - ref)))
        assert err < 2e-3, err

    k1, k2 = jax.random.split(key)
    check(k1, N=2, Cin=4, H=16, W=16, Cout=8, tile_rows=8)    # multi-tile two-phase-norm path (T=2)
    check(k2, N=1, Cin=3, H=32, W=32, Cout=16)                # auto tile size, single-tile path

    print("KERNEL_OK")
</pallas_src>

<mosaic_0001>
module attributes {stable_mosaic.version = 11 : i64} {
  func.func @kernel(%arg0: i32, %arg1: i32, %arg2: memref<1x10x18x4xbf16, #tpu.memory_space<vmem>>, %arg3: memref<3x3x4x128xbf16, #tpu.memory_space<vmem>>, %arg4: memref<1x128xf32, #tpu.memory_space<vmem>>, %arg5: memref<1x8x8x128xf32, #tpu.memory_space<vmem>>, %arg6: memref<4x16x128xf32, #tpu.memory_space<vmem>>, %arg7: memref<1x128xf32, #tpu.memory_space<vmem>>, %arg8: memref<1x128xf32, #tpu.memory_space<vmem>>) attributes {dimension_semantics = [#tpu.dimension_semantics<parallel>, #tpu.dimension_semantics<arbitrary>], iteration_bounds = array<i64: 2, 2>, scalar_prefetch = 0 : i64, scratch_operands = 3 : i64, tpu.core_type = #tpu.core_type<tc>, window_params = [{transform_indices = @transform_0, window_bounds = array<i64: 1, 10, 18, 4>}, {pipeline_mode = #tpu.pipeline_mode<synchronous>, transform_indices = @transform_1, window_bounds = array<i64: 3, 3, 4, 128>}, {pipeline_mode = #tpu.pipeline_mode<synchronous>, transform_indices = @transform_2, window_bounds = array<i64: 1, 128>}, {transform_indices = @transform_3, window_bounds = array<i64: 1, 8, 8, 128>}]} {
    %c0_i32 = arith.constant 0 : i32
    %0 = arith.cmpi eq, %arg1, %c0_i32 : i32
    %1 = arith.extui %0 : i1 to i32
    %c0_i32_0 = arith.constant 0 : i32
    %2 = arith.cmpi ne, %1, %c0_i32_0 : i32
    scf.if %2 {
      %cst_72 = arith.constant 0.000000e+00 : f32
      %90 = vector.broadcast %cst_72 : f32 to vector<1x128xf32>
      %c0_73 = arith.constant 0 : index
      %c0_74 = arith.constant 0 : index
      %91 = vector.load %arg7[%c0_73, %c0_74] : memref<1x128xf32, #tpu.memory_space<vmem>>, vector<1x128xf32>
      tpu.vector_store %arg7[%c0_73, %c0_74], %90 {strides = array<i32>} : memref<1x128xf32, #tpu.memory_space<vmem>>, vector<1x128xf32>,
      %cst_75 = arith.constant 0.000000e+00 : f32
      %92 = vector.broadcast %cst_75 : f32 to vector<1x128xf32>
      %c0_76 = arith.constant 0 : index
      %c0_77 = arith.constant 0 : index
      %93 = vector.load %arg8[%c0_76, %c0_77] : memref<1x128xf32, #tpu.memory_space<vmem>>, vector<1x128xf32>
      tpu.vector_store %arg8[%c0_76, %c0_77], %92 {strides = array<i32>} : memref<1x128xf32, #tpu.memory_space<vmem>>, vector<1x128xf32>,
    } else {
    }
    %c0 = arith.constant 0 : index
    %c0_1 = arith.constant 0 : index
    %c0_2 = arith.constant 0 : index
    %c0_3 = arith.constant 0 : index
    %3 = vector.load %arg2[%c0, %c0_1, %c0_2, %c0_3] : memref<1x10x18x4xbf16, #tpu.memory_space<vmem>>, vector<1x10x18x4xbf16>
    %4 = vector.shape_cast %3 : vector<1x10x18x4xbf16> to vector<10x18x4xbf16>
    %cst = arith.constant 0.000000e+00 : f32
    %5 = vector.broadcast %cst : f32 to vector<128x128xf32>
    %6 = vector.extract_strided_slice %4 {offsets = [0, 0, 0], sizes = [8, 16, 4], strides = [1, 1, 1]} : vector<10x18x4xbf16> to vector<8x16x4xbf16>
    %7 = vector.shape_cast %6 : vector<8x16x4xbf16> to vector<128x4xbf16>
    %c0_4 = arith.constant 0 : index
    %c0_5 = arith.constant 0 : index
    %c0_6 = arith.constant 0 : index
    %c0_7 = arith.constant 0 : index
    %8 = vector.load %arg3[%c0_4, %c0_5, %c0_6, %c0_7] : memref<3x3x4x128xbf16, #tpu.memory_space<vmem>>, vector<1x1x4x128xbf16>
    %9 = vector.shape_cast %8 : vector<1x1x4x128xbf16> to vector<4x128xbf16>
    %cst_8 = arith.constant dense<0.000000e+00> : vector<128x128xf32>
    %10 = tpu.matmul %7, %9, %cst_8 {dimension_numbers = #tpu.dot_dimension_numbers<[1], [0], [0], [1], [0, 0, 1, 1], [], []>} : vector<128x4xbf16>, vector<4x128xbf16>, vector<128x128xf32> -> vector<128x128xf32>
    %11 = arith.addf %5, %10 : vector<128x128xf32>
    %12 = vector.extract_strided_slice %4 {offsets = [0, 1, 0], sizes = [8, 16, 4], strides = [1, 1, 1]} : vector<10x18x4xbf16> to vector<8x16x4xbf16>
    %13 = vector.shape_cast %12 : vector<8x16x4xbf16> to vector<128x4xbf16>
    %c0_9 = arith.constant 0 : index
    %c1 = arith.constant 1 : index
    %c0_10 = arith.constant 0 : index
    %c0_11 = arith.constant 0 : index
    %14 = vector.load %arg3[%c0_9, %c1, %c0_10, %c0_11] : memref<3x3x4x128xbf16, #tpu.memory_space<vmem>>, vector<1x1x4x128xbf16>
    %15 = vector.shape_cast %14 : vector<1x1x4x128xbf16> to vector<4x128xbf16>
    %cst_12 = arith.constant dense<0.000000e+00> : vector<128x128xf32>
    %16 = tpu.matmul %13, %15, %cst_12 {dimension_numbers = #tpu.dot_dimension_numbers<[1], [0], [0], [1], [0, 0, 1, 1], [], []>} : vector<128x4xbf16>, vector<4x128xbf16>, vector<128x128xf32> -> vector<128x128xf32>
    %17 = arith.addf %11, %16 : vector<128x128xf32>
    %18 = vector.extract_strided_slice %4 {offsets = [0, 2, 0], sizes = [8, 16, 4], strides = [1, 1, 1]} : vector<10x18x4xbf16> to vector<8x16x4xbf16>
    %19 = vector.shape_cast %18 : vector<8x16x4xbf16> to vector<128x4xbf16>
    %c0_13 = arith.constant 0 : index
    %c2 = arith.constant 2 : index
    %c0_14 = arith.constant 0 : index
    %c0_15 = arith.constant 0 : index
    %20 = vector.load %arg3[%c0_13, %c2, %c0_14, %c0_15] : memref<3x3x4x128xbf16, #tpu.memory_space<vmem>>, vector<1x1x4x128xbf16>
    %21 = vector.shape_cast %20 : vector<1x1x4x128xbf16> to vector<4x128xbf16>
    %cst_16 = arith.constant dense<0.000000e+00> : vector<128x128xf32>
    %22 = tpu.matmul %19, %21, %cst_16 {dimension_numbers = #tpu.dot_dimension_numbers<[1], [0], [0], [1], [0, 0, 1, 1], [], []>} : vector<128x4xbf16>, vector<4x128xbf16>, vector<128x128xf32> -> vector<128x128xf32>
    %23 = arith.addf %17, %22 : vector<128x128xf32>
    %24 = vector.extract_strided_slice %4 {offsets = [1, 0, 0], sizes = [8, 16, 4], strides = [1, 1, 1]} : vector<10x18x4xbf16> to vector<8x16x4xbf16>
    %25 = vector.shape_cast %24 : vector<8x16x4xbf16> to vector<128x4xbf16>
    %c1_17 = arith.constant 1 : index
    %c0_18 = arith.constant 0 : index
    %c0_19 = arith.constant 0 : index
    %c0_20 = arith.constant 0 : index
    %26 = vector.load %arg3[%c1_17, %c0_18, %c0_19, %c0_20] : memref<3x3x4x128xbf16, #tpu.memory_space<vmem>>, vector<1x1x4x128xbf16>
    %27 = vector.shape_cast %26 : vector<1x1x4x128xbf16> to vector<4x128xbf16>
    %cst_21 = arith.constant dense<0.000000e+00> : vector<128x128xf32>
    %28 = tpu.matmul %25, %27, %cst_21 {dimension_numbers = #tpu.dot_dimension_numbers<[1], [0], [0], [1], [0, 0, 1, 1], [], []>} : vector<128x4xbf16>, vector<4x128xbf16>, vector<128x128xf32> -> vector<128x128xf32>
    %29 = arith.addf %23, %28 : vector<128x128xf32>
    %30 = vector.extract_strided_slice %4 {offsets = [1, 1, 0], sizes = [8, 16, 4], strides = [1, 1, 1]} : vector<10x18x4xbf16> to vector<8x16x4xbf16>
    %31 = vector.shape_cast %30 : vector<8x16x4xbf16> to vector<128x4xbf16>
    %c1_22 = arith.constant 1 : index
    %c1_23 = arith.constant 1 : index
    %c0_24 = arith.constant 0 : index
    %c0_25 = arith.constant 0 : index
    %32 = vector.load %arg3[%c1_22, %c1_23, %c0_24, %c0_25] : memref<3x3x4x128xbf16, #tpu.memory_space<vmem>>, vector<1x1x4x128xbf16>
    %33 = vector.shape_cast %32 : vector<1x1x4x128xbf16> to vector<4x128xbf16>
    %cst_26 = arith.constant dense<0.000000e+00> : vector<128x128xf32>
    %34 = tpu.matmul %31, %33, %cst_26 {dimension_numbers = #tpu.dot_dimension_numbers<[1], [0], [0], [1], [0, 0, 1, 1], [], []>} : vector<128x4xbf16>, vector<4x128xbf16>, vector<128x128xf32> -> vector<128x128xf32>
    %35 = arith.addf %29, %34 : vector<128x128xf32>
    %36 = vector.extract_strided_slice %4 {offsets = [1, 2, 0], sizes = [8, 16, 4], strides = [1, 1, 1]} : vector<10x18x4xbf16> to vector<8x16x4xbf16>
    %37 = vector.shape_cast %36 : vector<8x16x4xbf16> to vector<128x4xbf16>
    %c1_27 = arith.constant 1 : index
    %c2_28 = arith.constant 2 : index
    %c0_29 = arith.constant 0 : index
    %c0_30 = arith.constant 0 : index
    %38 = vector.load %arg3[%c1_27, %c2_28, %c0_29, %c0_30] : memref<3x3x4x128xbf16, #tpu.memory_space<vmem>>, vector<1x1x4x128xbf16>
    %39 = vector.shape_cast %38 : vector<1x1x4x128xbf16> to vector<4x128xbf16>
    %cst_31 = arith.constant dense<0.000000e+00> : vector<128x128xf32>
    %40 = tpu.matmul %37, %39, %cst_31 {dimension_numbers = #tpu.dot_dimension_numbers<[1], [0], [0], [1], [0, 0, 1, 1], [], []>} : vector<128x4xbf16>, vector<4x128xbf16>, vector<128x128xf32> -> vector<128x128xf32>
    %41 = arith.addf %35, %40 : vector<128x128xf32>
    %42 = vector.extract_strided_slice %4 {offsets = [2, 0, 0], sizes = [8, 16, 4], strides = [1, 1, 1]} : vector<10x18x4xbf16> to vector<8x16x4xbf16>
    %43 = vector.shape_cast %42 : vector<8x16x4xbf16> to vector<128x4xbf16>
    %c2_32 = arith.constant 2 : index
    %c0_33 = arith.constant 0 : index
    %c0_34 = arith.constant 0 : index
    %c0_35 = arith.constant 0 : index
    %44 = vector.load %arg3[%c2_32, %c0_33, %c0_34, %c0_35] : memref<3x3x4x128xbf16, #tpu.memory_space<vmem>>, vector<1x1x4x128xbf16>
    %45 = vector.shape_cast %44 : vector<1x1x4x128xbf16> to vector<4x128xbf16>
    %cst_36 = arith.constant dense<0.000000e+00> : vector<128x128xf32>
    %46 = tpu.matmul %43, %45, %cst_36 {dimension_numbers = #tpu.dot_dimension_numbers<[1], [0], [0], [1], [0, 0, 1, 1], [], []>} : vector<128x4xbf16>, vector<4x128xbf16>, vector<128x128xf32> -> vector<128x128xf32>
    %47 = arith.addf %41, %46 : vector<128x128xf32>
    %48 = vector.extract_strided_slice %4 {offsets = [2, 1, 0], sizes = [8, 16, 4], strides = [1, 1, 1]} : vector<10x18x4xbf16> to vector<8x16x4xbf16>
    %49 = vector.shape_cast %48 : vector<8x16x4xbf16> to vector<128x4xbf16>
    %c2_37 = arith.constant 2 : index
    %c1_38 = arith.constant 1 : index
    %c0_39 = arith.constant 0 : index
    %c0_40 = arith.constant 0 : index
    %50 = vector.load %arg3[%c2_37, %c1_38, %c0_39, %c0_40] : memref<3x3x4x128xbf16, #tpu.memory_space<vmem>>, vector<1x1x4x128xbf16>
    %51 = vector.shape_cast %50 : vector<1x1x4x128xbf16> to vector<4x128xbf16>
    %cst_41 = arith.constant dense<0.000000e+00> : vector<128x128xf32>
    %52 = tpu.matmul %49, %51, %cst_41 {dimension_numbers = #tpu.dot_dimension_numbers<[1], [0], [0], [1], [0, 0, 1, 1], [], []>} : vector<128x4xbf16>, vector<4x128xbf16>, vector<128x128xf32> -> vector<128x128xf32>
    %53 = arith.addf %47, %52 : vector<128x128xf32>
    %54 = vector.extract_strided_slice %4 {offsets = [2, 2, 0], sizes = [8, 16, 4], strides = [1, 1, 1]} : vector<10x18x4xbf16> to vector<8x16x4xbf16>
    %55 = vector.shape_cast %54 : vector<8x16x4xbf16> to vector<128x4xbf16>
    %c2_42 = arith.constant 2 : index
    %c2_43 = arith.constant 2 : index
    %c0_44 = arith.constant 0 : index
    %c0_45 = arith.constant 0 : index
    %56 = vector.load %arg3[%c2_42, %c2_43, %c0_44, %c0_45] : memref<3x3x4x128xbf16, #tpu.memory_space<vmem>>, vector<1x1x4x128xbf16>
    %57 = vector.shape_cast %56 : vector<1x1x4x128xbf16> to vector<4x128xbf16>
    %cst_46 = arith.constant dense<0.000000e+00> : vector<128x128xf32>
    %58 = tpu.matmul %55, %57, %cst_46 {dimension_numbers = #tpu.dot_dimension_numbers<[1], [0], [0], [1], [0, 0, 1, 1], [], []>} : vector<128x4xbf16>, vector<4x128xbf16>, vector<128x128xf32> -> vector<128x128xf32>
    %59 = arith.addf %53, %58 : vector<128x128xf32>
    %c0_47 = arith.constant 0 : index
    %c0_48 = arith.constant 0 : index
    %60 = vector.load %arg4[%c0_47, %c0_48] : memref<1x128xf32, #tpu.memory_space<vmem>>, vector<1x128xf32>
    %61 = vector.broadcast %60 : vector<1x128xf32> to vector<128x128xf32>
    %62 = arith.addf %59, %61 : vector<128x128xf32>
    %c0_49 = arith.constant 0 : index
    %c0_50 = arith.constant 0 : index
    %63 = vector.load %arg7[%c0_49, %c0_50] : memref<1x128xf32, #tpu.memory_space<vmem>>, vector<1x128xf32>
    %cst_51 = arith.constant dense<0.000000e+00> : vector<128xf32>
    %64 = vector.multi_reduction <add>, %62, %cst_51 [0] : vector<128x128xf32> to vector<128xf32>
    %65 = vector.shape_cast %64 : vector<128xf32> to vector<1x128xf32>
    %66 = arith.addf %63, %65 : vector<1x128xf32>
    %c0_52 = arith.constant 0 : index
    %c0_53 = arith.constant 0 : index
    %67 = vector.load %arg7[%c0_52, %c0_53] : memref<1x128xf32, #tpu.memory_space<vmem>>, vector<1x128xf32>
    tpu.vector_store %arg7[%c0_52, %c0_53], %66 {strides = array<i32>} : memref<1x128xf32, #tpu.memory_space<vmem>>, vector<1x128xf32>,
    %c0_54 = arith.constant 0 : index
    %c0_55 = arith.constant 0 : index
    %68 = vector.load %arg8[%c0_54, %c0_55] : memref<1x128xf32, #tpu.memory_space<vmem>>, vector<1x128xf32>
    %69 = arith.mulf %62, %62 : vector<128x128xf32>
    %cst_56 = arith.constant dense<0.000000e+00> : vector<128xf32>
    %70 = vector.multi_reduction <add>, %69, %cst_56 [0] : vector<128x128xf32> to vector<128xf32>
    %71 = vector.shape_cast %70 : vector<128xf32> to vector<1x128xf32>
    %72 = arith.addf %68, %71 : vector<1x128xf32>
    %c0_57 = arith.constant 0 : index
    %c0_58 = arith.constant 0 : index
    %73 = vector.load %arg8[%c0_57, %c0_58] : memref<1x128xf32, #tpu.memory_space<vmem>>, vector<1x128xf32>
    tpu.vector_store %arg8[%c0_57, %c0_58], %72 {strides = array<i32>} : memref<1x128xf32, #tpu.memory_space<vmem>>, vector<1x128xf32>,
    %74 = vector.shape_cast %62 : vector<128x128xf32> to vector<4x32x128xf32>
    %75 = vector.extract_strided_slice %74 {offsets = [0, 0, 0], sizes = [4, 16, 128], strides = [1, 1, 1]} : vector<4x32x128xf32> to vector<4x16x128xf32>
    %76 = vector.extract_strided_slice %74 {offsets = [0, 16, 0], sizes = [4, 16, 128], strides = [1, 1, 1]} : vector<4x32x128xf32> to vector<4x16x128xf32>
    %77 = arith.maximumf %75, %76 : vector<4x16x128xf32>
    %c0_59 = arith.constant 0 : index
    %c0_60 = arith.constant 0 : index
    %c0_61 = arith.constant 0 : index
    %78 = vector.load %arg6[%c0_59, %c0_60, %c0_61] : memref<4x16x128xf32, #tpu.memory_space<vmem>>, vector<4x16x128xf32>
    tpu.vector_store %arg6[%c0_59, %c0_60, %c0_61], %77 {strides = array<i32>} : memref<4x16x128xf32, #tpu.memory_space<vmem>>, vector<4x16x128xf32>,
    %c0_62 = arith.constant 0 : index
    %c0_63 = arith.constant 0 : index
    %c0_64 = arith.constant 0 : index
    %79 = tpu.strided_load %arg6[%c0_62, %c0_63, %c0_64] {strides = array<i32: 1, 2, 1>} : memref<4x16x128xf32, #tpu.memory_space<vmem>>, vector<4x8x128xf32>
    %c0_65 = arith.constant 0 : index
    %c1_66 = arith.constant 1 : index
    %c0_67 = arith.constant 0 : index
    %80 = tpu.strided_load %arg6[%c0_65, %c1_66, %c0_67] {strides = array<i32: 1, 2, 1>} : memref<4x16x128xf32, #tpu.memory_space<vmem>>, vector<4x8x128xf32>
    %81 = arith.maximumf %79, %80 : vector<4x8x128xf32>
    %c4_i32 = arith.constant 4 : i32
    %82 = arith.muli %arg1, %c4_i32 : i32
    %c0_68 = arith.constant 0 : index
    %83 = arith.index_cast %82 : i32 to index
    %c0_69 = arith.constant 0 : index
    %c0_70 = arith.constant 0 : index
    %84 = vector.load %arg5[%c0_68, %83, %c0_69, %c0_70] : memref<1x8x8x128xf32, #tpu.memory_space<vmem>>, vector<1x4x8x128xf32>
    %85 = vector.shape_cast %84 : vector<1x4x8x128xf32> to vector<4x8x128xf32>
    %86 = vector.shape_cast %81 : vector<4x8x128xf32> to vector<1x4x8x128xf32>
    tpu.vector_store %arg5[%c0_68, %83, %c0_69, %c0_70], %86 {strides = array<i32>} : memref<1x8x8x128xf32, #tpu.memory_space<vmem>>, vector<1x4x8x128xf32>,
    %c1_i32 = arith.constant 1 : i32
    %87 = arith.cmpi eq, %arg1, %c1_i32 : i32
    %88 = arith.extui %87 : i1 to i32
    %c0_i32_71 = arith.constant 0 : i32
    %89 = arith.cmpi ne, %88, %c0_i32_71 : i32
    scf.if %89 {
      %c0_72 = arith.constant 0 : index
      %c0_73 = arith.constant 0 : index
      %90 = vector.load %arg7[%c0_72, %c0_73] : memref<1x128xf32, #tpu.memory_space<vmem>>, vector<1x128xf32>
      %cst_74 = arith.constant 3.906250e-03 : f32
      %91 = vector.broadcast %cst_74 : f32 to vector<1x128xf32>
      %92 = arith.mulf %90, %91 : vector<1x128xf32>
      %c0_75 = arith.constant 0 : index
      %c0_76 = arith.constant 0 : index
      %93 = vector.load %arg8[%c0_75, %c0_76] : memref<1x128xf32, #tpu.memory_space<vmem>>, vector<1x128xf32>
      %cst_77 = arith.constant 3.906250e-03 : f32
      %94 = vector.broadcast %cst_77 : f32 to vector<1x128xf32>
      %95 = arith.mulf %93, %94 : vector<1x128xf32>
      %96 = arith.mulf %92, %92 : vector<1x128xf32>
      %97 = arith.subf %95, %96 : vector<1x128xf32>
      %cst_78 = arith.constant 0.000000e+00 : f32
      %98 = vector.broadcast %cst_78 : f32 to vector<1x128xf32>
      %99 = arith.maximumf %97, %98 : vector<1x128xf32>
      %cst_79 = arith.constant 9.99999974E-6 : f32
      %100 = vector.broadcast %cst_79 : f32 to vector<1x128xf32>
      %101 = arith.addf %99, %100 : vector<1x128xf32>
      %102 = math.rsqrt %101 : vector<1x128xf32>
      %c0_80 = arith.constant 0 : index
      %c0_81 = arith.constant 0 : index
      %c0_82 = arith.constant 0 : index
      %c0_83 = arith.constant 0 : index
      %103 = vector.load %arg5[%c0_80, %c0_81, %c0_82, %c0_83] : memref<1x8x8x128xf32, #tpu.memory_space<vmem>>, vector<1x8x8x128xf32>
      %104 = vector.shape_cast %103 : vector<1x8x8x128xf32> to vector<8x8x128xf32>
      %105 = vector.shape_cast %92 : vector<1x128xf32> to vector<1x1x128xf32>
      %106 = vector.broadcast %105 : vector<1x1x128xf32> to vector<8x8x128xf32>
      %107 = arith.subf %104, %106 : vector<8x8x128xf32>
      %108 = vector.shape_cast %102 : vector<1x128xf32> to vector<1x1x128xf32>
      %109 = vector.broadcast %108 : vector<1x1x128xf32> to vector<8x8x128xf32>
      %110 = arith.mulf %107, %109 : vector<8x8x128xf32>
      %cst_84 = arith.constant 0.000000e+00 : f32
      %111 = vector.broadcast %cst_84 : f32 to vector<8x8x128xf32>
      %112 = arith.maximumf %110, %111 : vector<8x8x128xf32>
      %c0_85 = arith.constant 0 : index
      %c0_86 = arith.constant 0 : index
      %c0_87 = arith.constant 0 : index
      %c0_88 = arith.constant 0 : index
      %113 = vector.load %arg5[%c0_85, %c0_86, %c0_87, %c0_88] : memref<1x8x8x128xf32, #tpu.memory_space<vmem>>, vector<1x8x8x128xf32>
      %114 = vector.shape_cast %113 : vector<1x8x8x128xf32> to vector<8x8x128xf32>
      %115 = vector.shape_cast %112 : vector<8x8x128xf32> to vector<1x8x8x128xf32>
      tpu.vector_store %arg5[%c0_85, %c0_86, %c0_87, %c0_88], %115 {strides = array<i32>} : memref<1x8x8x128xf32, #tpu.memory_space<vmem>>, vector<1x8x8x128xf32>,
    } else {
    }
    return
  }
  func.func @transform_0(%arg0: i32, %arg1: i32) -> (i32, i32, i32, i32) {
    %c2_i32 = arith.constant 2 : i32
    %0 = arith.muli %arg0, %c2_i32 : i32
    %1 = arith.addi %0, %arg1 : i32
    %c0_i32 = arith.constant 0 : i32
    %c0_i32_0 = arith.constant 0 : i32
    %c0_i32_1 = arith.constant 0 : i32
    %c0_i32_2 = arith.constant 0 : i32
    return %1, %c0_i32, %c0_i32_0, %c0_i32_1 : i32, i32, i32, i32
  }
  func.func @transform_1(%arg0: i32, %arg1: i32) -> (i32, i32, i32, i32) {
    %c0_i32 = arith.constant 0 : i32
    %c0_i32_0 = arith.constant 0 : i32
    %c0_i32_1 = arith.constant 0 : i32
    %c0_i32_2 = arith.constant 0 : i32
    %c0_i32_3 = arith.constant 0 : i32
    return %c0_i32, %c0_i32_0, %c0_i32_1, %c0_i32_2 : i32, i32, i32, i32
  }
  func.func @transform_2(%arg0: i32, %arg1: i32) -> (i32, i32) {
    %c0_i32 = arith.constant 0 : i32
    %c0_i32_0 = arith.constant 0 : i32
    %c0_i32_1 = arith.constant 0 : i32
    return %c0_i32, %c0_i32_0 : i32, i32
  }
  func.func @transform_3(%arg0: i32, %arg1: i32) -> (i32, i32, i32, i32) {
    %c0_i32 = arith.constant 0 : i32
    %c0_i32_0 = arith.constant 0 : i32
    %c0_i32_1 = arith.constant 0 : i32
    %c0_i32_2 = arith.constant 0 : i32
    return %arg0, %c0_i32, %c0_i32_0, %c0_i32_1 : i32, i32, i32, i32
  }
}

</mosaic_0001>

<llo_original>
// kernel: tpu_custom_call.1
$region0: #{tpu_custom_call.1}
  #allocation0 [shape = 'u32[]', space=smem, size = 0x4, offset = 0x4, fixed_abs, tag = 'smem constant byte address 0x4 - core index']
  #allocation1 [shape = 'u32[144,128]{1,0:T(1,128)}', space=vmem, size = 0x12000, scoped, tag = 'internal scratch']
  #allocation2 [shape = 'f32[4,16,128]{2,1,0:T(8,128)}', space=vmem, size = 0x8000, scoped, tag = 'scratch operand']
  #allocation3 [shape = 'f32[1,128]{1,0:T(1,128)}', space=vmem, size = 0x200, scoped, tag = 'scratch operand']
  #allocation4 [shape = 'f32[1,128]{1,0:T(1,128)}', space=vmem, size = 0x200, scoped, tag = 'scratch operand']
  %s0 = inlined_call_operand.vmem [shape: bf16[4,10,18,4], index: 0, kind: input, shape index: {}]
  %s1 = inlined_call_operand.vmem [shape: bf16[3,3,4,128], index: 1, kind: input, shape index: {}]
  %s2 = inlined_call_operand.vmem [shape: f32[1,128], index: 2, kind: input, shape index: {}]
  %s3 = inlined_call_operand.hbm [shape: f32[2,8,8,128], index: 3, kind: output, shape index: {}]
  %s4 = sld [smem:[#allocation0]]
  $region53: #{tpu_custom_call.1} parent=0
    _
  %s6 = ssub.s32 1, %s4
  %s7 = scalar_select 0, %s6, %s4
  $region1: #{tpu_custom_call.1} parent=0
    #allocation5 [shape = 'u8[65536]{0}', space=vmem, size = 0x10000, scoped, tag = 'output window, operand 0']
    #allocation6 [shape = 's32[2]{0}', space=sflag, size = 0x8, scoped, tag = 'scoped memory for tpu_custom_call.1']
    %8 = vsyncpa [#allocation6], 0
    %s9 = scalar_lea.sflag [#allocation6], 1
    %10 = vsyncpa %s9, 0
    loop: start=0, step=1, limit=6
    $region2: #{tpu_custom_call.1} parent=1 // loop_pre_header
      _
    $region3: #{tpu_custom_call.1} parent=1 // loop_header
      %s12 = sphi 0, %s16
      %p13 = scmp.ge.s32.totalorder %s12, 6
      %s19 = sphi 0, %s31
      %s20 = sphi 0, %s27
      %s21 = sphi 0, %s19
      %s22 = sphi 0, %s20
      %s23 = sphi 0, %s21
      %s24 = sphi 0, %s22
      %s38 = sphi 0, %s40
      %s41 = sphi 0, %s38
      %s42 = sphi 0, %s41
      %s58 = sphi 0, %s42
      %s62 = sphi 0, %s62
      %s64 = sphi 0, %s62
      %s65 = sphi 0, %s64
      %s79 = sphi 0, %s65
      %s83 = sphi 0, %s83
      %s85 = sphi 0, %s83
      %s86 = sphi 0, %s85
      %s100 = sphi 0, %s86
      %s106 = sphi 0, %s108
      %s109 = sphi 0, %s106
      %s110 = sphi 0, %s109
      %s126 = sphi 0, %s110
    $region4: #{tpu_custom_call.1} parent=1 // loop_header_branch
      %15 = sbr.rel (%p13) target = $region8
    $region5: #{tpu_custom_call.1} parent=1 // loop_body
      %s17 = ssub.s32 %s12, 1
      %s18 = ssub.s32 %s12, 2
      %s25 = sadd.s32 1, %s20
      %p26 = scmp.ge.s32.totalorder %s25, 2
      %s27 = scalar_select %p26, 0, %s25
      %s28 = sadd.s32 1, %s19
      %s29 = scalar_select %p26, %s28, %s19
      %p30 = scmp.ge.s32.totalorder %s29, 2
      %s31 = scalar_select %p30, 0, %s29
      %s32 = smul.u32 %s19, 2
      %s33 = sadd.s32 %s32, %s20
      %s34 = smul.u32 %s31, 2
      %s35 = sadd.s32 %s34, %s27
      %s36 = ssub.s32 %s33, %s35
      %p37 = scmp.eq.s32.totalorder %s36, 0
      %s39 = sadd.s32 %s38, 1
      %s40 = scalar_select %p37, %s38, %s39
      %p43 = pneg %p37
      %p44 = scmp.eq.s32.totalorder %s12, 3
      %p45 = por %p43, %p44
      %p46 = scmp.ne.s32.totalorder %s38, %s41
      %p47 = scmp.eq.s32.totalorder %s12, 0
      %p48 = por %p46, %p47
      %p49 = scmp.ne.s32.totalorder %s38, %s41
      %p50 = scmp.eq.s32.totalorder %s17, 3
      %p51 = por %p49, %p50
      %p52 = scmp.ne.s32.totalorder %s41, %s42
      %p53 = scmp.eq.s32.totalorder %s17, 0
      %p54 = por %p52, %p53
      %p55 = scmp.ne.s32.totalorder %s41, %s42
      %p56 = scmp.eq.s32.totalorder %s18, 3
      %p57 = por %p55, %p56
      %p59 = scmp.ne.s32.totalorder %s42, %s58
      %p60 = scmp.eq.s32.totalorder %s18, 0
      %p61 = por %p59, %p60
      %s63 = sadd.s32 %s62, 1
      %p66 = scmp.eq.s32.totalorder %s12, 3
      %p67 = scmp.ne.s32.totalorder %s62, %s64
      %p68 = scmp.eq.s32.totalorder %s12, 0
      %p69 = por %p67, %p68
      %p70 = scmp.ne.s32.totalorder %s62, %s64
      %p71 = scmp.eq.s32.totalorder %s17, 3
      %p72 = por %p70, %p71
      %p73 = scmp.ne.s32.totalorder %s64, %s65
      %p74 = scmp.eq.s32.totalorder %s17, 0
      %p75 = por %p73, %p74
      %p76 = scmp.ne.s32.totalorder %s64, %s65
      %p77 = scmp.eq.s32.totalorder %s18, 3
      %p78 = por %p76, %p77
      %p80 = scmp.ne.s32.totalorder %s65, %s79
      %p81 = scmp.eq.s32.totalorder %s18, 0
      %p82 = por %p80, %p81
      %s84 = sadd.s32 %s83, 1
      %p87 = scmp.eq.s32.totalorder %s12, 3
      %p88 = scmp.ne.s32.totalorder %s83, %s85
      %p89 = scmp.eq.s32.totalorder %s12, 0
      %p90 = por %p88, %p89
      %p91 = scmp.ne.s32.totalorder %s83, %s85
      %p92 = scmp.eq.s32.totalorder %s17, 3
      %p93 = por %p91, %p92
      %p94 = scmp.ne.s32.totalorder %s85, %s86
      %p95 = scmp.eq.s32.totalorder %s17, 0
      %p96 = por %p94, %p95
      %p97 = scmp.ne.s32.totalorder %s85, %s86
      %p98 = scmp.eq.s32.totalorder %s18, 3
      %p99 = por %p97, %p98
      %p101 = scmp.ne.s32.totalorder %s86, %s100
      %p102 = scmp.eq.s32.totalorder %s18, 0
      %p103 = por %p101, %p102
      %s104 = ssub.s32 %s19, %s31
      %p105 = scmp.eq.s32.totalorder %s104, 0
      %s107 = sadd.s32 %s106, 1
      %s108 = scalar_select %p105, %s106, %s107
      %p111 = pneg %p105
      %p112 = scmp.eq.s32.totalorder %s12, 3
      %p113 = por %p111, %p112
      %p114 = scmp.ne.s32.totalorder %s106, %s109
      %p115 = scmp.eq.s32.totalorder %s12, 0
      %p116 = por %p114, %p115
      %p117 = scmp.ne.s32.totalorder %s106, %s109
      %p118 = scmp.eq.s32.totalorder %s17, 3
      %p119 = por %p117, %p118
      %p120 = scmp.ne.s32.totalorder %s109, %s110
      %p121 = scmp.eq.s32.totalorder %s17, 0
      %p122 = por %p120, %p121
      %p123 = scmp.ne.s32.totalorder %s109, %s110
      %p124 = scmp.eq.s32.totalorder %s18, 3
      %p125 = por %p123, %p124
      %p127 = scmp.ne.s32.totalorder %s110, %s126
      %p128 = scmp.eq.s32.totalorder %s18, 0
      %p129 = por %p127, %p128
      %p130 = scmp.le.s32.totalorder 1, %s12
      %p131 = scmp.lt.s32.totalorder %s12, 5
      %p132 = pnand %p130, %p131
      %p133 = pneg %p132
      // Predicated region
      $region9: #{tpu_custom_call.1} parent=5 // pred_check
        _
      $region10: #{tpu_custom_call.1} parent=5 // pred_check_branch
        %135 = sbr.rel (%p132) target = $region12
      $region11: #{tpu_custom_call.1} parent=5 // pred_region
        %s136 = ssub.s32 %s12, 1
        // Predicated region
        $region13: #{tpu_custom_call.1} parent=11 // pred_check
          %p137 = pneg %p75
        $region14: #{tpu_custom_call.1} parent=11 // pred_check_branch
          %139 = sbr.rel (%p137) target = $region16
        $region15: #{tpu_custom_call.1} parent=11 // pred_region
          _
        $region16: #{tpu_custom_call.1} parent=11 // pred_fallthru
          _
        // Predicated region
        $region17: #{tpu_custom_call.1} parent=11 // pred_check
          %p140 = pneg %p96
        $region18: #{tpu_custom_call.1} parent=11 // pred_check_branch
          %142 = sbr.rel (%p140) target = $region20
        $region19: #{tpu_custom_call.1} parent=11 // pred_region
          _
        $region20: #{tpu_custom_call.1} parent=11 // pred_fallthru
          _
      $region12: #{tpu_custom_call.1} parent=5 // pred_fallthru
        _
      %p143 = scmp.lt.s32.totalorder %s12, 4
      // Predicated region
      $region21: #{tpu_custom_call.1} parent=5 // pred_check
        %p144 = pneg %p143
      $region22: #{tpu_custom_call.1} parent=5 // pred_check_branch
        %146 = sbr.rel (%p144) target = $region24
      $region23: #{tpu_custom_call.1} parent=5 // pred_region
        // Predicated region
        $region25: #{tpu_custom_call.1} parent=23 // pred_check
          %p147 = pneg %p48
        $region26: #{tpu_custom_call.1} parent=23 // pred_check_branch
          %149 = sbr.rel (%p147) target = $region28
        $region27: #{tpu_custom_call.1} parent=23 // pred_region
          %s150 = smul.u32 %s19, 2
          %s151 = sadd.s32 %s150, %s20
          %p152 = scmp.lt.s32.totalorder %s151, 3
          %s153 = scalar_select %p152, %s151, 3
          %s154 = smul.addr %s153, 30
          %s155 = smul.addr %s154, 4
          %s156 = scalar_lea.vmem %s0, %s155
          %s157 = smul.u32 %s19, 2
          %s158 = sadd.s32 %s157, %s20
        $region28: #{tpu_custom_call.1} parent=23 // pred_fallthru
          _
      $region24: #{tpu_custom_call.1} parent=5 // pred_fallthru
        _
      %p159 = scmp.le.s32.totalorder 1, %s12
      %p160 = scmp.lt.s32.totalorder %s12, 5
      %p161 = pnand %p159, %p160
      %p162 = pneg %p161
      // Predicated region
      $region29: #{tpu_custom_call.1} parent=5 // pred_check
        _
      $region30: #{tpu_custom_call.1} parent=5 // pred_check_branch
        %164 = sbr.rel (%p161) target = $region32
      $region31: #{tpu_custom_call.1} parent=5 // pred_region
        %s165 = ssub.s32 %s12, 1
        %s166 = smul.u32 %s21, 2
        %s167 = sadd.s32 %s166, %s22
        %p168 = scmp.lt.s32.totalorder %s167, 3
        %s169 = scalar_select %p168, %s167, 3
        %s170 = smul.addr %s169, 30
        %s171 = smul.addr %s170, 4
        %s172 = scalar_lea.vmem %s0, %s171
        %p173 = pneg %p54
        %p174 = pneg %p51
        %p175 = pneg %p75
        %p176 = pneg %p72
        %p177 = pneg %p96
        %p178 = pneg %p93
        %p179 = pneg %p122
        %p180 = pneg %p119
        %s181 = sand.u32 %s109, 1
        %s182 = scalar_lea.sflag [#allocation6], %s181
        %s183 = sand.u32 %s109, 1
        %s184 = smul.addr %s183, 64
        %s185 = scalar_lea.vmem [#allocation5], %s184
        %s186 = smul.u32 %s21, 2
        %s187 = sadd.s32 %s186, %s22
        %p188 = scmp.lt.s32.totalorder %s187, 3
        %s189 = scalar_select %p188, %s187, 3
        %s190 = smul.addr %s189, 30
        %s191 = smul.addr %s190, 4
        %s192 = scalar_lea.vmem %s0, %s191
        %s193 = smul.u32 %s21, 2
        %s194 = sadd.s32 %s193, %s22
        %p196 = scmp.eq.s32.totalorder %s22, 0
        // Predicated region
        $region33: #{tpu_custom_call.1} parent=31 // pred_check
          %p197 = pneg %p196
        $region34: #{tpu_custom_call.1} parent=31 // pred_check_branch
          %199 = sbr.rel (%p197) target = $region36
        $region35: #{tpu_custom_call.1} parent=31 // pred_region
          %200 = vst [vmem:[#allocation3] sm:$0x1] 0.0
          %201 = vst [vmem:[#allocation4] sm:$0x1] 0.0
        $region36: #{tpu_custom_call.1} parent=31 // pred_fallthru
          _
        %v202 = vld [vmem:[%s192] sm:$0xf]
        %v203 = vld [vmem:[%s192 + $0x4] sm:$0xf]
        %v204 = vld [vmem:[%s192 + $0x8] sm:$0x1]
        %v205 = vld [vmem:[%s192 + $0xc] sm:$0xf]
        %v206 = vld [vmem:[%s192 + $0x10] sm:$0xf]
        %v207 = vld [vmem:[%s192 + $0x14] sm:$0x1]
        %v208 = vld [vmem:[%s192 + $0x18] sm:$0xf]
        %v209 = vld [vmem:[%s192 + $0x1c] sm:$0xf]
        %v210 = vld [vmem:[%s192 + $0x20] sm:$0x1]
        %v211 = vld [vmem:[%s192 + $0x24] sm:$0xf]
        %v212 = vld [vmem:[%s192 + $0x28] sm:$0xf]
        %v213 = vld [vmem:[%s192 + $0x2c] sm:$0x1]
        %v214 = vld [vmem:[%s192 + $0x30] sm:$0xf]
        %v215 = vld [vmem:[%s192 + $0x34] sm:$0xf]
        %v216 = vld [vmem:[%s192 + $0x38] sm:$0x1]
        %v217 = vld [vmem:[%s192 + $0x3c] sm:$0xf]
        %v218 = vld [vmem:[%s192 + $0x40] sm:$0xf]
        %v219 = vld [vmem:[%s192 + $0x44] sm:$0x1]
        %v220 = vld [vmem:[%s192 + $0x48] sm:$0xf]
        %v221 = vld [vmem:[%s192 + $0x4c] sm:$0xf]
        %v222 = vld [vmem:[%s192 + $0x50] sm:$0x1]
        %v223 = vld [vmem:[%s192 + $0x54] sm:$0xf]
        %v224 = vld [vmem:[%s192 + $0x58] sm:$0xf]
        %v225 = vld [vmem:[%s192 + $0x5c] sm:$0x1]
        %v226 = vld [vmem:[%s192 + $0x60] sm:$0xf]
        %v227 = vld [vmem:[%s192 + $0x64] sm:$0xf]
        %v228 = vld [vmem:[%s192 + $0x68] sm:$0x1]
        %v229 = vld [vmem:[%s192 + $0x6c] sm:$0xf]
        %v230 = vld [vmem:[%s192 + $0x70] sm:$0xf]
        %v231 = vld [vmem:[%s192 + $0x74] sm:$0x1]
        %v232 = vld [vmem:[%s1] sm:$0x3]
        %vm233 = vsmask.f32 3328
        %vm234 = vsmask.f32 7440
        %vm235 = vmor %vm233, %vm234
        %v237 = vshrl.u32 %v202, 16
        %v239 = vrot.slane %v237, 4
        %v240 = vshll.u32 %v202, 16
        %v242 = vrot.slane %v240, 5
        %v243 = vor.u32 %v239, %v242
        %v244 = vrot.slane %v243, 4
        %v246 = vshll.u32 %v203, 16
        %v248 = vrot.slane %v246, 5
        %v249 = vsel %vm235, %v244, %v248
        %v250 = vshrl.u32 %v203, 16
        %v252 = vrot.slane %v250, 4
        %v253 = vor.u32 %v252, %v248
        %v254 = vrot.slane %v253, 4
        %v256 = vshll.u32 %v204, 16
        %v258 = vrot.slane %v256, 5
        %v259 = vsel %vm235, %v254, %v258
        %v261 = vshrl.u32 %v205, 16
        %v263 = vrot.slane %v261, 4
        %v264 = vshll.u32 %v205, 16
        %v266 = vrot.slane %v264, 5
        %v267 = vor.u32 %v263, %v266
        %v268 = vrot.slane %v267, 4
        %v270 = vshll.u32 %v206, 16
        %v272 = vrot.slane %v270, 5
        %v273 = vsel %vm235, %v268, %v272
        %v274 = vshrl.u32 %v206, 16
        %v276 = vrot.slane %v274, 4
        %v277 = vor.u32 %v276, %v272
        %v278 = vrot.slane %v277, 4
        %v280 = vshll.u32 %v207, 16
        %v282 = vrot.slane %v280, 5
        %v283 = vsel %vm235, %v278, %v282
        %v285 = vshrl.u32 %v208, 16
        %v287 = vrot.slane %v285, 4
        %v288 = vshll.u32 %v208, 16
        %v290 = vrot.slane %v288, 5
        %v291 = vor.u32 %v287, %v290
        %v292 = vrot.slane %v291, 4
        %v294 = vshll.u32 %v209, 16
        %v296 = vrot.slane %v294, 5
        %v297 = vsel %vm235, %v292, %v296
        %v298 = vshrl.u32 %v209, 16
        %v300 = vrot.slane %v298, 4
        %v301 = vor.u32 %v300, %v296
        %v302 = vrot.slane %v301, 4
        %v304 = vshll.u32 %v210, 16
        %v306 = vrot.slane %v304, 5
        %v307 = vsel %vm235, %v302, %v306
        %v309 = vshrl.u32 %v211, 16
        %v311 = vrot.slane %v309, 4
        %v312 = vshll.u32 %v211, 16
        %v314 = vrot.slane %v312, 5
        %v315 = vor.u32 %v311, %v314
        %v316 = vrot.slane %v315, 4
        %v318 = vshll.u32 %v212, 16
        %v320 = vrot.slane %v318, 5
        %v321 = vsel %vm235, %v316, %v320
        %v322 = vshrl.u32 %v212, 16
        %v324 = vrot.slane %v322, 4
        %v325 = vor.u32 %v324, %v320
        %v326 = vrot.slane %v325, 4
        %v328 = vshll.u32 %v213, 16
        %v330 = vrot.slane %v328, 5
        %v331 = vsel %vm235, %v326, %v330
        %v333 = vshrl.u32 %v214, 16
        %v335 = vrot.slane %v333, 4
        %v336 = vshll.u32 %v214, 16
        %v338 = vrot.slane %v336, 5
        %v339 = vor.u32 %v335, %v338
        %v340 = vrot.slane %v339, 4
        %v342 = vshll.u32 %v215, 16
        %v344 = vrot.slane %v342, 5
        %v345 = vsel %vm235, %v340, %v344
        %v346 = vshrl.u32 %v215, 16
        %v348 = vrot.slane %v346, 4
        %v349 = vor.u32 %v348, %v344
        %v350 = vrot.slane %v349, 4
        %v352 = vshll.u32 %v216, 16
        %v354 = vrot.slane %v352, 5
        %v355 = vsel %vm235, %v350, %v354
        %v357 = vshrl.u32 %v217, 16
        %v359 = vrot.slane %v357, 4
        %v360 = vshll.u32 %v217, 16
        %v362 = vrot.slane %v360, 5
        %v363 = vor.u32 %v359, %v362
        %v364 = vrot.slane %v363, 4
        %v366 = vshll.u32 %v218, 16
        %v368 = vrot.slane %v366, 5
        %v369 = vsel %vm235, %v364, %v368
        %v370 = vshrl.u32 %v218, 16
        %v372 = vrot.slane %v370, 4
        %v373 = vor.u32 %v372, %v368
        %v374 = vrot.slane %v373, 4
        %v376 = vshll.u32 %v219, 16
        %v378 = vrot.slane %v376, 5
        %v379 = vsel %vm235, %v374, %v378
        %v381 = vshrl.u32 %v220, 16
        %v383 = vrot.slane %v381, 4
        %v384 = vshll.u32 %v220, 16
        %v386 = vrot.slane %v384, 5
        %v387 = vor.u32 %v383, %v386
        %v388 = vrot.slane %v387, 4
        %v390 = vshll.u32 %v221, 16
        %v392 = vrot.slane %v390, 5
        %v393 = vsel %vm235, %v388, %v392
        %v394 = vshrl.u32 %v221, 16
        %v396 = vrot.slane %v394, 4
        %v397 = vor.u32 %v396, %v392
        %v398 = vrot.slane %v397, 4
        %v400 = vshll.u32 %v222, 16
        %v402 = vrot.slane %v400, 5
        %v403 = vsel %vm235, %v398, %v402
        %v405 = vshrl.u32 %v223, 16
        %v407 = vrot.slane %v405, 4
        %v408 = vshll.u32 %v223, 16
        %v410 = vrot.slane %v408, 5
        %v411 = vor.u32 %v407, %v410
        %v412 = vrot.slane %v411, 4
        %v414 = vshll.u32 %v224, 16
        %v416 = vrot.slane %v414, 5
        %v417 = vsel %vm235, %v412, %v416
        %v418 = vshrl.u32 %v224, 16
        %v420 = vrot.slane %v418, 4
        %v421 = vor.u32 %v420, %v416
        %v422 = vrot.slane %v421, 4
        %v424 = vshll.u32 %v225, 16
        %v426 = vrot.slane %v424, 5
        %v427 = vsel %vm235, %v422, %v426
        %s428 = scalar_lea.vmem %s1, 2
        %v429 = vld [vmem:[%s428] sm:$0x3]
        %v430 = vunpack.c.l.b16 %v249
        %v431 = vunpack.c.l.b16 %v259
        %v432 = vunpack.c.l.b16 %v273
        %v433 = vunpack.c.l.b16 %v283
        %v434 = vunpack.c.l.b16 %v297
        %v435 = vunpack.c.l.b16 %v307
        %v436 = vunpack.c.l.b16 %v321
        %v437 = vunpack.c.l.b16 %v331
        %v438 = vunpack.c.l.b16 %v345
        %v439 = vunpack.c.l.b16 %v355
        %v440 = vunpack.c.l.b16 %v369
        %v441 = vunpack.c.l.b16 %v379
        %v442 = vunpack.c.l.b16 %v393
        %v443 = vunpack.c.l.b16 %v403
        %v444 = vunpack.c.l.b16 %v417
        %v445 = vunpack.c.l.b16 %v427
        %v446 = vpack.c.b16 %v431, %v430
        %v447 = vpack.c.b16 %v433, %v432
        %v448 = vpack.c.b16 %v435, %v434
        %v449 = vpack.c.b16 %v437, %v436
        %v450 = vpack.c.b16 %v439, %v438
        %v451 = vpack.c.b16 %v441, %v440
        %v452 = vpack.c.b16 %v443, %v442
        %v453 = vpack.c.b16 %v445, %v444
        %vm454 = vcmask 31744
        %v456 = vsel %vm454, %v446, 0
        %v459 = vsel %vm454, %v447, 0
        %v462 = vsel %vm454, %v448, 0
        %v465 = vsel %vm454, %v449, 0
        %v468 = vsel %vm454, %v450, 0
        %v471 = vsel %vm454, %v451, 0
        %v474 = vsel %vm454, %v452, 0
        %v477 = vsel %vm454, %v453, 0
        %vm479 = vcmask 1041408
        %v481 = vsel %vm479, %v429, 0
        %483 = vmatprep.subr.bf16.mxu0 0
        %484 = vmatpush1.bf16.msra.mxu0 %v481
        %485 = vmatprep.subr.bf16.mxu0 0
        %486 = vmatpush1.bf16.msra.mxu0 0
        %487 = vmatprep.subr.bf16.mxu0 0
        %488 = vmatpush1.bf16.msra.mxu0 0
        %489 = vmatprep.subr.bf16.mxu0 0
        %490 = vmatpush1.bf16.msra.mxu0 0
        %491 = vmatprep.subr.bf16.mxu0 0
        %492 = vmatpush1.bf16.msra.mxu0 0
        %493 = vmatprep.subr.bf16.mxu0 0
        %494 = vmatpush1.bf16.msra.mxu0 0
        %495 = vmatprep.subr.bf16.mxu0 0
        %496 = vmatpush1.bf16.msra.mxu0 0
        %497 = vmatprep.subr.bf16.mxu0 0
        %498 = vmatpush1.bf16.msra.mxu0 0
        %499 = vmatprep.subr.bf16.mxu0 0
        %500 = vmatpush1.bf16.msra.mxu0 0
        %501 = vmatprep.subr.bf16.mxu0 0
        %502 = vmatpush1.bf16.msra.mxu0 0
        %503 = vmatprep.subr.bf16.mxu0 0
        %504 = vmatpush1.bf16.msra.mxu0 0
        %505 = vmatprep.subr.bf16.mxu0 0
        %506 = vmatpush1.bf16.msra.mxu0 0
        %507 = vmatprep.subr.bf16.mxu0 0
        %508 = vmatpush1.bf16.msra.mxu0 0
        %509 = vmatprep.subr.bf16.mxu0 0
        %510 = vmatpush1.bf16.msra.mxu0 0
        %511 = vmatprep.subr.bf16.mxu0 0
        %512 = vmatpush1.bf16.msra.mxu0 0
        %513 = vmatprep.subr.bf16.mxu0 0
        %514 = vmatpush1.bf16.msra.mxu0 0
        %515 = vmatprep.mubr.bf16.mxu0 0
        %516 = vmatmul.mubr.bf16.gmra.mrb[0].mxu0 %v456
        %v517 = vpop.f32.mrb[0].mxu0
        %v518 = vadd.f32 0.0, %v517
        %v519 = vpop.f32.mrb[0].mxu0
        %v520 = vpop.f32.mrb[0].mxu0
        %v521 = vadd.f32 0.0, %v520
        %v522 = vpop.f32.mrb[0].mxu0
        %523 = vmatprep.mubr.bf16.mxu0 0
        %524 = vmatmul.mubr.bf16.gmra.mrb[0].mxu0 %v459
        %v525 = vpop.f32.mrb[0].mxu0
        %v526 = vadd.f32 0.0, %v525
        %v527 = vpop.f32.mrb[0].mxu0
        %v528 = vpop.f32.mrb[0].mxu0
        %v529 = vadd.f32 0.0, %v528
        %v530 = vpop.f32.mrb[0].mxu0
        %531 = vmatprep.mubr.bf16.mxu0 0
        %532 = vmatmul.mubr.bf16.gmra.mrb[0].mxu0 %v462
        %v533 = vpop.f32.mrb[0].mxu0
        %v534 = vadd.f32 0.0, %v533
        %v535 = vpop.f32.mrb[0].mxu0
        %v536 = vpop.f32.mrb[0].mxu0
        %v537 = vadd.f32 0.0, %v536
        %v538 = vpop.f32.mrb[0].mxu0
        %539 = vmatprep.mubr.bf16.mxu0 0
        %540 = vmatmul.mubr.bf16.gmra.mrb[0].mxu0 %v465
        %v541 = vpop.f32.mrb[0].mxu0
        %v542 = vadd.f32 0.0, %v541
        %v543 = vpop.f32.mrb[0].mxu0
        %v544 = vpop.f32.mrb[0].mxu0
        %v545 = vadd.f32 0.0, %v544
        %v546 = vpop.f32.mrb[0].mxu0
        %547 = vmatprep.mubr.bf16.mxu0 0
        %548 = vmatmul.mubr.bf16.gmra.mrb[0].mxu0 %v468
        %v549 = vpop.f32.mrb[0].mxu0
        %v550 = vadd.f32 0.0, %v549
        %v551 = vpop.f32.mrb[0].mxu0
        %v552 = vpop.f32.mrb[0].mxu0
        %v553 = vadd.f32 0.0, %v552
        %v554 = vpop.f32.mrb[0].mxu0
        %555 = vmatprep.mubr.bf16.mxu0 0
        %556 = vmatmul.mubr.bf16.gmra.mrb[0].mxu0 %v471
        %v557 = vpop.f32.mrb[0].mxu0
        %v558 = vadd.f32 0.0, %v557
        %v559 = vpop.f32.mrb[0].mxu0
        %v560 = vpop.f32.mrb[0].mxu0
        %v561 = vadd.f32 0.0, %v560
        %v562 = vpop.f32.mrb[0].mxu0
        %563 = vmatprep.mubr.bf16.mxu0 0
        %564 = vmatmul.mubr.bf16.gmra.mrb[0].mxu0 %v474
        %v565 = vpop.f32.mrb[0].mxu0
        %v566 = vadd.f32 0.0, %v565
        %v567 = vpop.f32.mrb[0].mxu0
        %v568 = vpop.f32.mrb[0].mxu0
        %v569 = vadd.f32 0.0, %v568
        %v570 = vpop.f32.mrb[0].mxu0
        %571 = vmatprep.mubr.bf16.mxu0 0
        %572 = vmatmul.mubr.bf16.gmra.mrb[0].mxu0 %v477
        %v573 = vpop.f32.mrb[0].mxu0
        %v574 = vadd.f32 0.0, %v573
        %v575 = vpop.f32.mrb[0].mxu0
        %v576 = vpop.f32.mrb[0].mxu0
        %v577 = vadd.f32 0.0, %v576
        %v578 = vpop.f32.mrb[0].mxu0
        %579 = vdwg.mxu0
        %v596 = vunpack.c.l.b16 %v202
        %v597 = vunpack.c.l.b16 %v203
        %v598 = vunpack.c.l.b16 %v205
        %v599 = vunpack.c.l.b16 %v206
        %v600 = vunpack.c.l.b16 %v208
        %v601 = vunpack.c.l.b16 %v209
        %v602 = vunpack.c.l.b16 %v211
        %v603 = vunpack.c.l.b16 %v212
        %v604 = vunpack.c.l.b16 %v214
        %v605 = vunpack.c.l.b16 %v215
        %v606 = vunpack.c.l.b16 %v217
        %v607 = vunpack.c.l.b16 %v218
        %v608 = vunpack.c.l.b16 %v220
        %v609 = vunpack.c.l.b16 %v221
        %v610 = vunpack.c.l.b16 %v223
        %v611 = vunpack.c.l.b16 %v224
        %v612 = vpack.c.b16 %v597, %v596
        %v613 = vpack.c.b16 %v599, %v598
        %v614 = vpack.c.b16 %v601, %v600
        %v615 = vpack.c.b16 %v603, %v602
        %v616 = vpack.c.b16 %v605, %v604
        %v617 = vpack.c.b16 %v607, %v606
        %v618 = vpack.c.b16 %v609, %v608
        %v619 = vpack.c.b16 %v611, %v610
        %v621 = vsel %vm454, %v612, 0
        %v624 = vsel %vm454, %v613, 0
        %v627 = vsel %vm454, %v614, 0
        %v630 = vsel %vm454, %v615, 0
        %v633 = vsel %vm454, %v616, 0
        %v636 = vsel %vm454, %v617, 0
        %v639 = vsel %vm454, %v618, 0
        %v642 = vsel %vm454, %v619, 0
        %v645 = vsel %vm479, %v232, 0
        %647 = vmatprep.subr.bf16.mxu0 0
        %648 = vmatpush1.bf16.msra.mxu0 %v645
        %649 = vmatprep.subr.bf16.mxu0 0
        %650 = vmatpush1.bf16.msra.mxu0 0
        %651 = vmatprep.subr.bf16.mxu0 0
        %652 = vmatpush1.bf16.msra.mxu0 0
        %653 = vmatprep.subr.bf16.mxu0 0
        %654 = vmatpush1.bf16.msra.mxu0 0
        %655 = vmatprep.subr.bf16.mxu0 0
        %656 = vmatpush1.bf16.msra.mxu0 0
        %657 = vmatprep.subr.bf16.mxu0 0
        %658 = vmatpush1.bf16.msra.mxu0 0
        %659 = vmatprep.subr.bf16.mxu0 0
        %660 = vmatpush1.bf16.msra.mxu0 0
        %661 = vmatprep.subr.bf16.mxu0 0
        %662 = vmatpush1.bf16.msra.mxu0 0
        %663 = vmatprep.subr.bf16.mxu0 0
        %664 = vmatpush1.bf16.msra.mxu0 0
        %665 = vmatprep.subr.bf16.mxu0 0
        %666 = vmatpush1.bf16.msra.mxu0 0
        %667 = vmatprep.subr.bf16.mxu0 0
        %668 = vmatpush1.bf16.msra.mxu0 0
        %669 = vmatprep.subr.bf16.mxu0 0
        %670 = vmatpush1.bf16.msra.mxu0 0
        %671 = vmatprep.subr.bf16.mxu0 0
        %672 = vmatpush1.bf16.msra.mxu0 0
        %673 = vmatprep.subr.bf16.mxu0 0
        %674 = vmatpush1.bf16.msra.mxu0 0
        %675 = vmatprep.subr.bf16.mxu0 0
        %676 = vmatpush1.bf16.msra.mxu0 0
        %677 = vmatprep.subr.bf16.mxu0 0
        %678 = vmatpush1.bf16.msra.mxu0 0
        %679 = vmatprep.mubr.bf16.mxu0 0
        %680 = vmatmul.mubr.bf16.gmra.mrb[0].mxu0 %v621
        %v681 = vpop.f32.mrb[0].mxu0
        %v682 = vadd.f32 %v518, %v681
        %v683 = vpop.f32.mrb[0].mxu0
        %v684 = vpop.f32.mrb[0].mxu0
        %v685 = vadd.f32 %v521, %v684
        %v686 = vpop.f32.mrb[0].mxu0
        %687 = vmatprep.mubr.bf16.mxu0 0
        %688 = vmatmul.mubr.bf16.gmra.mrb[0].mxu0 %v624
        %v689 = vpop.f32.mrb[0].mxu0
        %v690 = vadd.f32 %v526, %v689
        %v691 = vpop.f32.mrb[0].mxu0
        %v692 = vpop.f32.mrb[0].mxu0
        %v693 = vadd.f32 %v529, %v692
        %v694 = vpop.f32.mrb[0].mxu0
        %695 = vmatprep.mubr.bf16.mxu0 0
        %696 = vmatmul.mubr.bf16.gmra.mrb[0].mxu0 %v627
        %v697 = vpop.f32.mrb[0].mxu0
        %v698 = vadd.f32 %v534, %v697
        %v699 = vpop.f32.mrb[0].mxu0
        %v700 = vpop.f32.mrb[0].mxu0
        %v701 = vadd.f32 %v537, %v700
        %v702 = vpop.f32.mrb[0].mxu0
        %703 = vmatprep.mubr.bf16.mxu0 0
        %704 = vmatmul.mubr.bf16.gmra.mrb[0].mxu0 %v630
        %v705 = vpop.f32.mrb[0].mxu0
        %v706 = vadd.f32 %v542, %v705
        %v707 = vpop.f32.mrb[0].mxu0
        %v708 = vpop.f32.mrb[0].mxu0
        %v709 = vadd.f32 %v545, %v708
        %v710 = vpop.f32.mrb[0].mxu0
        %711 = vmatprep.mubr.bf16.mxu0 0
        %712 = vmatmul.mubr.bf16.gmra.mrb[0].mxu0 %v633
        %v713 = vpop.f32.mrb[0].mxu0
        %v714 = vadd.f32 %v550, %v713
        %v715 = vpop.f32.mrb[0].mxu0
        %v716 = vpop.f32.mrb[0].mxu0
        %v717 = vadd.f32 %v553, %v716
        %v718 = vpop.f32.mrb[0].mxu0
        %719 = vmatprep.mubr.bf16.mxu0 0
        %720 = vmatmul.mubr.bf16.gmra.mrb[0].mxu0 %v636
        %v721 = vpop.f32.mrb[0].mxu0
        %v722 = vadd.f32 %v558, %v721
        %v723 = vpop.f32.mrb[0].mxu0
        %v724 = vpop.f32.mrb[0].mxu0
        %v725 = vadd.f32 %v561, %v724
        %v726 = vpop.f32.mrb[0].mxu0
        %727 = vmatprep.mubr.bf16.mxu0 0
        %728 = vmatmul.mubr.bf16.gmra.mrb[0].mxu0 %v639
        %v729 = vpop.f32.mrb[0].mxu0
        %v730 = vadd.f32 %v566, %v729
        %v731 = vpop.f32.mrb[0].mxu0
        %v732 = vpop.f32.mrb[0].mxu0
        %v733 = vadd.f32 %v569, %v732
        %v734 = vpop.f32.mrb[0].mxu0
        %735 = vmatprep.mubr.bf16.mxu0 0
        %736 = vmatmul.mubr.bf16.gmra.mrb[0].mxu0 %v642
        %v737 = vpop.f32.mrb[0].mxu0
        %v738 = vadd.f32 %v574, %v737
        %v739 = vpop.f32.mrb[0].mxu0
        %v740 = vpop.f32.mrb[0].mxu0
        %v741 = vadd.f32 %v577, %v740
        %v742 = vpop.f32.mrb[0].mxu0
        %743 = vdwg.mxu0
        %vm752 = vcmask 1042432
        %vm753 = vcmask 1046532
        %vm754 = vmor %vm752, %vm753
        %v755 = vrot.slane %v202, 5
        %v756 = vrot.slane %v755, 4
        %v757 = vrot.slane %v203, 5
        %v758 = vsel %vm754, %v756, %v757
        %v759 = vrot.slane %v757, 4
        %v760 = vrot.slane %v204, 5
        %v761 = vsel %vm754, %v759, %v760
        %v762 = vrot.slane %v205, 5
        %v763 = vrot.slane %v762, 4
        %v764 = vrot.slane %v206, 5
        %v765 = vsel %vm754, %v763, %v764
        %v766 = vrot.slane %v764, 4
        %v767 = vrot.slane %v207, 5
        %v768 = vsel %vm754, %v766, %v767
        %v769 = vrot.slane %v208, 5
        %v770 = vrot.slane %v769, 4
        %v771 = vrot.slane %v209, 5
        %v772 = vsel %vm754, %v770, %v771
        %v773 = vrot.slane %v771, 4
        %v774 = vrot.slane %v210, 5
        %v775 = vsel %vm754, %v773, %v774
        %v776 = vrot.slane %v211, 5
        %v777 = vrot.slane %v776, 4
        %v778 = vrot.slane %v212, 5
        %v779 = vsel %vm754, %v777, %v778
        %v780 = vrot.slane %v778, 4
        %v781 = vrot.slane %v213, 5
        %v782 = vsel %vm754, %v780, %v781
        %v783 = vrot.slane %v214, 5
        %v784 = vrot.slane %v783, 4
        %v785 = vrot.slane %v215, 5
        %v786 = vsel %vm754, %v784, %v785
        %v787 = vrot.slane %v785, 4
        %v788 = vrot.slane %v216, 5
        %v789 = vsel %vm754, %v787, %v788
        %v790 = vrot.slane %v217, 5
        %v791 = vrot.slane %v790, 4
        %v792 = vrot.slane %v218, 5
        %v793 = vsel %vm754, %v791, %v792
        %v794 = vrot.slane %v792, 4
        %v795 = vrot.slane %v219, 5
        %v796 = vsel %vm754, %v794, %v795
        %v797 = vrot.slane %v220, 5
        %v798 = vrot.slane %v797, 4
        %v799 = vrot.slane %v221, 5
        %v800 = vsel %vm754, %v798, %v799
        %v801 = vrot.slane %v799, 4
        %v802 = vrot.slane %v222, 5
        %v803 = vsel %vm754, %v801, %v802
        %v804 = vrot.slane %v223, 5
        %v805 = vrot.slane %v804, 4
        %v806 = vrot.slane %v224, 5
        %v807 = vsel %vm754, %v805, %v806
        %v808 = vrot.slane %v806, 4
        %v809 = vrot.slane %v225, 5
        %v810 = vsel %vm754, %v808, %v809
        %s811 = scalar_lea.vmem %s1, 4
        %v812 = vld [vmem:[%s811] sm:$0x3]
        %v813 = vunpack.c.l.b16 %v758
        %v814 = vunpack.c.l.b16 %v761
        %v815 = vunpack.c.l.b16 %v765
        %v816 = vunpack.c.l.b16 %v768
        %v817 = vunpack.c.l.b16 %v772
        %v818 = vunpack.c.l.b16 %v775
        %v819 = vunpack.c.l.b16 %v779
        %v820 = vunpack.c.l.b16 %v782
        %v821 = vunpack.c.l.b16 %v786
        %v822 = vunpack.c.l.b16 %v789
        %v823 = vunpack.c.l.b16 %v793
        %v824 = vunpack.c.l.b16 %v796
        %v825 = vunpack.c.l.b16 %v800
        %v826 = vunpack.c.l.b16 %v803
        %v827 = vunpack.c.l.b16 %v807
        %v828 = vunpack.c.l.b16 %v810
        %v829 = vpack.c.b16 %v814, %v813
        %v830 = vpack.c.b16 %v816, %v815
        %v831 = vpack.c.b16 %v818, %v817
        %v832 = vpack.c.b16 %v820, %v819
        %v833 = vpack.c.b16 %v822, %v821
        %v834 = vpack.c.b16 %v824, %v823
        %v835 = vpack.c.b16 %v826, %v825
        %v836 = vpack.c.b16 %v828, %v827
        %v838 = vsel %vm454, %v829, 0
        %v841 = vsel %vm454, %v830, 0
        %v844 = vsel %vm454, %v831, 0
        %v847 = vsel %vm454, %v832, 0
        %v850 = vsel %vm454, %v833, 0
        %v853 = vsel %vm454, %v834, 0
        %v856 = vsel %vm454, %v835, 0
        %v859 = vsel %vm454, %v836, 0
        %v862 = vsel %vm479, %v812, 0
        %864 = vmatprep.subr.bf16.mxu0 0
        %865 = vmatpush1.bf16.msra.mxu0 %v862
        %866 = vmatprep.subr.bf16.mxu0 0
        %867 = vmatpush1.bf16.msra.mxu0 0
        %868 = vmatprep.subr.bf16.mxu0 0
        %869 = vmatpush1.bf16.msra.mxu0 0
        %870 = vmatprep.subr.bf16.mxu0 0
        %871 = vmatpush1.bf16.msra.mxu0 0
        %872 = vmatprep.subr.bf16.mxu0 0
        %873 = vmatpush1.bf16.msra.mxu0 0
        %874 = vmatprep.subr.bf16.mxu0 0
        %875 = vmatpush1.bf16.msra.mxu0 0
        %876 = vmatprep.subr.bf16.mxu0 0
        %877 = vmatpush1.bf16.msra.mxu0 0
        %878 = vmatprep.subr.bf16.mxu0 0
        %879 = vmatpush1.bf16.msra.mxu0 0
        %880 = vmatprep.subr.bf16.mxu0 0
        %881 = vmatpush1.bf16.msra.mxu0 0
        %882 = vmatprep.subr.bf16.mxu0 0
        %883 = vmatpush1.bf16.msra.mxu0 0
        %884 = vmatprep.subr.bf16.mxu0 0
        %885 = vmatpush1.bf16.msra.mxu0 0
        %886 = vmatprep.subr.bf16.mxu0 0
        %887 = vmatpush1.bf16.msra.mxu0 0
        %888 = vmatprep.subr.bf16.mxu0 0
        %889 = vmatpush1.bf16.msra.mxu0 0
        %890 = vmatprep.subr.bf16.mxu0 0
        %891 = vmatpush1.bf16.msra.mxu0 0
        %892 = vmatprep.subr.bf16.mxu0 0
        %893 = vmatpush1.bf16.msra.mxu0 0
        %894 = vmatprep.subr.bf16.mxu0 0
        %895 = vmatpush1.bf16.msra.mxu0 0
        %896 = vmatprep.mubr.bf16.mxu0 0
        %897 = vmatmul.mubr.bf16.gmra.mrb[0].mxu0 %v838
        %v898 = vpop.f32.mrb[0].mxu0
        %v899 = vadd.f32 0.0, %v898
        %v900 = vpop.f32.mrb[0].mxu0
        %v901 = vpop.f32.mrb[0].mxu0
        %v902 = vadd.f32 0.0, %v901
        %v903 = vpop.f32.mrb[0].mxu0
        %904 = vmatprep.mubr.bf16.mxu0 0
        %905 = vmatmul.mubr.bf16.gmra.mrb[0].mxu0 %v841
        %v906 = vpop.f32.mrb[0].mxu0
        %v907 = vadd.f32 0.0, %v906
        %v908 = vpop.f32.mrb[0].mxu0
        %v909 = vpop.f32.mrb[0].mxu0
        %v910 = vadd.f32 0.0, %v909
        %v911 = vpop.f32.mrb[0].mxu0
        %912 = vmatprep.mubr.bf16.mxu0 0
        %913 = vmatmul.mubr.bf16.gmra.mrb[0].mxu0 %v844
        %v914 = vpop.f32.mrb[0].mxu0
        %v915 = vadd.f32 0.0, %v914
        %v916 = vpop.f32.mrb[0].mxu0
        %v917 = vpop.f32.mrb[0].mxu0
        %v918 = vadd.f32 0.0, %v917
        %v919 = vpop.f32.mrb[0].mxu0
        %920 = vmatprep.mubr.bf16.mxu0 0
        %921 = vmatmul.mubr.bf16.gmra.mrb[0].mxu0 %v847
        %v922 = vpop.f32.mrb[0].mxu0
        %v923 = vadd.f32 0.0, %v922
        %v924 = vpop.f32.mrb[0].mxu0
        %v925 = vpop.f32.mrb[0].mxu0
        %v926 = vadd.f32 0.0, %v925
        %v927 = vpop.f32.mrb[0].mxu0
        %928 = vmatprep.mubr.bf16.mxu0 0
        %929 = vmatmul.mubr.bf16.gmra.mrb[0].mxu0 %v850
        %v930 = vpop.f32.mrb[0].mxu0
        %v931 = vadd.f32 0.0, %v930
        %v932 = vpop.f32.mrb[0].mxu0
        %v933 = vpop.f32.mrb[0].mxu0
        %v934 = vadd.f32 0.0, %v933
        %v935 = vpop.f32.mrb[0].mxu0
        %936 = vmatprep.mubr.bf16.mxu0 0
        %937 = vmatmul.mubr.bf16.gmra.mrb[0].mxu0 %v853
        %v938 = vpop.f32.mrb[0].mxu0
        %v939 = vadd.f32 0.0, %v938
        %v940 = vpop.f32.mrb[0].mxu0
        %v941 = vpop.f32.mrb[0].mxu0
        %v942 = vadd.f32 0.0, %v941
        %v943 = vpop.f32.mrb[0].mxu0
        %944 = vmatprep.mubr.bf16.mxu0 0
        %945 = vmatmul.mubr.bf16.gmra.mrb[0].mxu0 %v856
        %v946 = vpop.f32.mrb[0].mxu0
        %v947 = vadd.f32 0.0, %v946
        %v948 = vpop.f32.mrb[0].mxu0
        %v949 = vpop.f32.mrb[0].mxu0
        %v950 = vadd.f32 0.0, %v949
        %v951 = vpop.f32.mrb[0].mxu0
        %952 = vmatprep.mubr.bf16.mxu0 0
        %953 = vmatmul.mubr.bf16.gmra.mrb[0].mxu0 %v859
        %v954 = vpop.f32.mrb[0].mxu0
        %v955 = vadd.f32 0.0, %v954
        %v956 = vpop.f32.mrb[0].mxu0
        %v957 = vpop.f32.mrb[0].mxu0
        %v958 = vadd.f32 0.0, %v957
        %v959 = vpop.f32.mrb[0].mxu0
        %960 = vdwg.mxu0
        %v961 = vadd.f32 %v682, %v899
        %v962 = vadd.f32 %v685, %v902
        %v963 = vadd.f32 %v690, %v907
        %v964 = vadd.f32 %v693, %v910
        %v965 = vadd.f32 %v698, %v915
        %v966 = vadd.f32 %v701, %v918
        %v967 = vadd.f32 %v706, %v923
        %v968 = vadd.f32 %v709, %v926
        %v969 = vadd.f32 %v714, %v931
        %v970 = vadd.f32 %v717, %v934
        %v971 = vadd.f32 %v722, %v939
        %v972 = vadd.f32 %v725, %v942
        %v973 = vadd.f32 %v730, %v947
        %v974 = vadd.f32 %v733, %v950
        %v975 = vadd.f32 %v738, %v955
        %v976 = vadd.f32 %v741, %v958
        %s977 = scalar_lea.vmem %s1, 6
        %v978 = vld [vmem:[%s977] sm:$0x3]
        %v981 = vunpack.c.l.b16 %v226
        %v982 = vunpack.c.l.b16 %v227
        %v983 = vpack.c.b16 %v982, %v981
        %v985 = vsel %vm454, %v983, 0
        %v988 = vsel %vm479, %v978, 0
        %990 = vmatprep.subr.bf16.mxu0 0
        %991 = vmatpush1.bf16.msra.mxu0 %v988
        %992 = vmatprep.subr.bf16.mxu0 0
        %993 = vmatpush1.bf16.msra.mxu0 0
        %994 = vmatprep.subr.bf16.mxu0 0
        %995 = vmatpush1.bf16.msra.mxu0 0
        %996 = vmatprep.subr.bf16.mxu0 0
        %997 = vmatpush1.bf16.msra.mxu0 0
        %998 = vmatprep.subr.bf16.mxu0 0
        %999 = vmatpush1.bf16.msra.mxu0 0
        %1000 = vmatprep.subr.bf16.mxu0 0
        %1001 = vmatpush1.bf16.msra.mxu0 0
        %1002 = vmatprep.subr.bf16.mxu0 0
        %1003 = vmatpush1.bf16.msra.mxu0 0
        %1004 = vmatprep.subr.bf16.mxu0 0
        %1005 = vmatpush1.bf16.msra.mxu0 0
        %1006 = vmatprep.subr.bf16.mxu0 0
        %1007 = vmatpush1.bf16.msra.mxu0 0
        %1008 = vmatprep.subr.bf16.mxu0 0
        %1009 = vmatpush1.bf16.msra.mxu0 0
        %1010 = vmatprep.subr.bf16.mxu0 0
        %1011 = vmatpush1.bf16.msra.mxu0 0
        %1012 = vmatprep.subr.bf16.mxu0 0
        %1013 = vmatpush1.bf16.msra.mxu0 0
        %1014 = vmatprep.subr.bf16.mxu0 0
        %1015 = vmatpush1.bf16.msra.mxu0 0
        %1016 = vmatprep.subr.bf16.mxu0 0
        %1017 = vmatpush1.bf16.msra.mxu0 0
        %1018 = vmatprep.subr.bf16.mxu0 0
        %1019 = vmatpush1.bf16.msra.mxu0 0
        %1020 = vmatprep.subr.bf16.mxu0 0
        %1021 = vmatpush1.bf16.msra.mxu0 0
        %1022 = vmatprep.mubr.bf16.mxu0 0
        %1023 = vmatmul.mubr.bf16.gmra.mrb[0].mxu0 %v624
        %v1024 = vpop.f32.mrb[0].mxu0
        %v1025 = vadd.f32 0.0, %v1024
        %v1026 = vpop.f32.mrb[0].mxu0
        %v1027 = vpop.f32.mrb[0].mxu0
        %v1028 = vadd.f32 0.0, %v1027
        %v1029 = vpop.f32.mrb[0].mxu0
        %1030 = vmatprep.mubr.bf16.mxu0 0
        %1031 = vmatmul.mubr.bf16.gmra.mrb[0].mxu0 %v627
        %v1032 = vpop.f32.mrb[0].mxu0
        %v1033 = vadd.f32 0.0, %v1032
        %v1034 = vpop.f32.mrb[0].mxu0
        %v1035 = vpop.f32.mrb[0].mxu0
        %v1036 = vadd.f32 0.0, %v1035
        %v1037 = vpop.f32.mrb[0].mxu0
        %1038 = vmatprep.mubr.bf16.mxu0 0
        %1039 = vmatmul.mubr.bf16.gmra.mrb[0].mxu0 %v630
        %v1040 = vpop.f32.mrb[0].mxu0
        %v1041 = vadd.f32 0.0, %v1040
        %v1042 = vpop.f32.mrb[0].mxu0
        %v1043 = vpop.f32.mrb[0].mxu0
        %v1044 = vadd.f32 0.0, %v1043
        %v1045 = vpop.f32.mrb[0].mxu0
        %1046 = vmatprep.mubr.bf16.mxu0 0
        %1047 = vmatmul.mubr.bf16.gmra.mrb[0].mxu0 %v633
        %v1048 = vpop.f32.mrb[0].mxu0
        %v1049 = vadd.f32 0.0, %v1048
        %v1050 = vpop.f32.mrb[0].mxu0
        %v1051 = vpop.f32.mrb[0].mxu0
        %v1052 = vadd.f32 0.0, %v1051
        %v1053 = vpop.f32.mrb[0].mxu0
        %1054 = vmatprep.mubr.bf16.mxu0 0
        %1055 = vmatmul.mubr.bf16.gmra.mrb[0].mxu0 %v636
        %v1056 = vpop.f32.mrb[0].mxu0
        %v1057 = vadd.f32 0.0, %v1056
        %v1058 = vpop.f32.mrb[0].mxu0
        %v1059 = vpop.f32.mrb[0].mxu0
        %v1060 = vadd.f32 0.0, %v1059
        %v1061 = vpop.f32.mrb[0].mxu0
        %1062 = vmatprep.mubr.bf16.mxu0 0
        %1063 = vmatmul.mubr.bf16.gmra.mrb[0].mxu0 %v639
        %v1064 = vpop.f32.mrb[0].mxu0
        %v1065 = vadd.f32 0.0, %v1064
        %v1066 = vpop.f32.mrb[0].mxu0
        %v1067 = vpop.f32.mrb[0].mxu0
        %v1068 = vadd.f32 0.0, %v1067
        %v1069 = vpop.f32.mrb[0].mxu0
        %1070 = vmatprep.mubr.bf16.mxu0 0
        %1071 = vmatmul.mubr.bf16.gmra.mrb[0].mxu0 %v642
        %v1072 = vpop.f32.mrb[0].mxu0
        %v1073 = vadd.f32 0.0, %v1072
        %v1074 = vpop.f32.mrb[0].mxu0
        %v1075 = vpop.f32.mrb[0].mxu0
        %v1076 = vadd.f32 0.0, %v1075
        %v1077 = vpop.f32.mrb[0].mxu0
        %1078 = vmatprep.mubr.bf16.mxu0 0
        %1079 = vmatmul.mubr.bf16.gmra.mrb[0].mxu0 %v985
        %v1080 = vpop.f32.mrb[0].mxu0
        %v1081 = vadd.f32 0.0, %v1080
        %v1082 = vpop.f32.mrb[0].mxu0
        %v1083 = vpop.f32.mrb[0].mxu0
        %v1084 = vadd.f32 0.0, %v1083
        %v1085 = vpop.f32.mrb[0].mxu0
        %1086 = vdwg.mxu0
        %v1087 = vadd.f32 %v961, %v1025
        %v1088 = vadd.f32 %v962, %v1028
        %v1089 = vadd.f32 %v963, %v1033
        %v1090 = vadd.f32 %v964, %v1036
        %v1091 = vadd.f32 %v965, %v1041
        %v1092 = vadd.f32 %v966, %v1044
        %v1093 = vadd.f32 %v967, %v1049
        %v1094 = vadd.f32 %v968, %v1052
        %v1095 = vadd.f32 %v969, %v1057
        %v1096 = vadd.f32 %v970, %v1060
        %v1097 = vadd.f32 %v971, %v1065
        %v1098 = vadd.f32 %v972, %v1068
        %v1099 = vadd.f32 %v973, %v1073
        %v1100 = vadd.f32 %v974, %v1076
        %v1101 = vadd.f32 %v975, %v1081
        %v1102 = vadd.f32 %v976, %v1084
        %v1104 = vshrl.u32 %v226, 16
        %v1106 = vrot.slane %v1104, 4
        %v1107 = vshll.u32 %v226, 16
        %v1109 = vrot.slane %v1107, 5
        %v1110 = vor.u32 %v1106, %v1109
        %v1111 = vrot.slane %v1110, 4
        %v1113 = vshll.u32 %v227, 16
        %v1115 = vrot.slane %v1113, 5
        %v1116 = vsel %vm235, %v1111, %v1115
        %v1117 = vshrl.u32 %v227, 16
        %v1119 = vrot.slane %v1117, 4
        %v1120 = vor.u32 %v1119, %v1115
        %v1121 = vrot.slane %v1120, 4
        %v1123 = vshll.u32 %v228, 16
        %v1125 = vrot.slane %v1123, 5
        %v1126 = vsel %vm235, %v1121, %v1125
        %s1127 = scalar_lea.vmem %s1, 8
        %v1128 = vld [vmem:[%s1127] sm:$0x3]
        %v1129 = vunpack.c.l.b16 %v1116
        %v1130 = vunpack.c.l.b16 %v1126
        %v1131 = vpack.c.b16 %v1130, %v1129
        %v1133 = vsel %vm454, %v1131, 0
        %v1136 = vsel %vm479, %v1128, 0
        %1138 = vmatprep.subr.bf16.mxu0 0
        %1139 = vmatpush1.bf16.msra.mxu0 %v1136
        %1140 = vmatprep.subr.bf16.mxu0 0
        %1141 = vmatpush1.bf16.msra.mxu0 0
        %1142 = vmatprep.subr.bf16.mxu0 0
        %1143 = vmatpush1.bf16.msra.mxu0 0
        %1144 = vmatprep.subr.bf16.mxu0 0
        %1145 = vmatpush1.bf16.msra.mxu0 0
        %1146 = vmatprep.subr.bf16.mxu0 0
        %1147 = vmatpush1.bf16.msra.mxu0 0
        %1148 = vmatprep.subr.bf16.mxu0 0
        %1149 = vmatpush1.bf16.msra.mxu0 0
        %1150 = vmatprep.subr.bf16.mxu0 0
        %1151 = vmatpush1.bf16.msra.mxu0 0
        %1152 = vmatprep.subr.bf16.mxu0 0
        %1153 = vmatpush1.bf16.msra.mxu0 0
        %1154 = vmatprep.subr.bf16.mxu0 0
        %1155 = vmatpush1.bf16.msra.mxu0 0
        %1156 = vmatprep.subr.bf16.mxu0 0
        %1157 = vmatpush1.bf16.msra.mxu0 0
        %1158 = vmatprep.subr.bf16.mxu0 0
        %1159 = vmatpush1.bf16.msra.mxu0 0
        %1160 = vmatprep.subr.bf16.mxu0 0
        %1161 = vmatpush1.bf16.msra.mxu0 0
        %1162 = vmatprep.subr.bf16.mxu0 0
        %1163 = vmatpush1.bf16.msra.mxu0 0
        %1164 = vmatprep.subr.bf16.mxu0 0
        %1165 = vmatpush1.bf16.msra.mxu0 0
        %1166 = vmatprep.subr.bf16.mxu0 0
        %1167 = vmatpush1.bf16.msra.mxu0 0
        %1168 = vmatprep.subr.bf16.mxu0 0
        %1169 = vmatpush1.bf16.msra.mxu0 0
        %1170 = vmatprep.mubr.bf16.mxu0 0
        %1171 = vmatmul.mubr.bf16.gmra.mrb[0].mxu0 %v459
        %v1172 = vpop.f32.mrb[0].mxu0
        %v1173 = vadd.f32 0.0, %v1172
        %v1174 = vpop.f32.mrb[0].mxu0
        %v1175 = vpop.f32.mrb[0].mxu0
        %v1176 = vadd.f32 0.0, %v1175
        %v1177 = vpop.f32.mrb[0].mxu0
        %1178 = vmatprep.mubr.bf16.mxu0 0
        %1179 = vmatmul.mubr.bf16.gmra.mrb[0].mxu0 %v462
        %v1180 = vpop.f32.mrb[0].mxu0
        %v1181 = vadd.f32 0.0, %v1180
        %v1182 = vpop.f32.mrb[0].mxu0
        %v1183 = vpop.f32.mrb[0].mxu0
        %v1184 = vadd.f32 0.0, %v1183
        %v1185 = vpop.f32.mrb[0].mxu0
        %1186 = vmatprep.mubr.bf16.mxu0 0
        %1187 = vmatmul.mubr.bf16.gmra.mrb[0].mxu0 %v465
        %v1188 = vpop.f32.mrb[0].mxu0
        %v1189 = vadd.f32 0.0, %v1188
        %v1190 = vpop.f32.mrb[0].mxu0
        %v1191 = vpop.f32.mrb[0].mxu0
        %v1192 = vadd.f32 0.0, %v1191
        %v1193 = vpop.f32.mrb[0].mxu0
        %1194 = vmatprep.mubr.bf16.mxu0 0
        %1195 = vmatmul.mubr.bf16.gmra.mrb[0].mxu0 %v468
        %v1196 = vpop.f32.mrb[0].mxu0
        %v1197 = vadd.f32 0.0, %v1196
        %v1198 = vpop.f32.mrb[0].mxu0
        %v1199 = vpop.f32.mrb[0].mxu0
        %v1200 = vadd.f32 0.0, %v1199
        %v1201 = vpop.f32.mrb[0].mxu0
        %1202 = vmatprep.mubr.bf16.mxu0 0
        %1203 = vmatmul.mubr.bf16.gmra.mrb[0].mxu0 %v471
        %v1204 = vpop.f32.mrb[0].mxu0
        %v1205 = vadd.f32 0.0, %v1204
        %v1206 = vpop.f32.mrb[0].mxu0
        %v1207 = vpop.f32.mrb[0].mxu0
        %v1208 = vadd.f32 0.0, %v1207
        %v1209 = vpop.f32.mrb[0].mxu0
        %1210 = vmatprep.mubr.bf16.mxu0 0
        %1211 = vmatmul.mubr.bf16.gmra.mrb[0].mxu0 %v474
        %v1212 = vpop.f32.mrb[0].mxu0
        %v1213 = vadd.f32 0.0, %v1212
        %v1214 = vpop.f32.mrb[0].mxu0
        %v1215 = vpop.f32.mrb[0].mxu0
        %v1216 = vadd.f32 0.0, %v1215
        %v1217 = vpop.f32.mrb[0].mxu0
        %1218 = vmatprep.mubr.bf16.mxu0 0
        %1219 = vmatmul.mubr.bf16.gmra.mrb[0].mxu0 %v477
        %v1220 = vpop.f32.mrb[0].mxu0
        %v1221 = vadd.f32 0.0, %v1220
        %v1222 = vpop.f32.mrb[0].mxu0
        %v1223 = vpop.f32.mrb[0].mxu0
        %v1224 = vadd.f32 0.0, %v1223
        %v1225 = vpop.f32.mrb[0].mxu0
        %1226 = vmatprep.mubr.bf16.mxu0 0
        %1227 = vmatmul.mubr.bf16.gmra.mrb[0].mxu0 %v1133
        %v1228 = vpop.f32.mrb[0].mxu0
        %v1229 = vadd.f32 0.0, %v1228
        %v1230 = vpop.f32.mrb[0].mxu0
        %v1231 = vpop.f32.mrb[0].mxu0
        %v1232 = vadd.f32 0.0, %v1231
        %v1233 = vpop.f32.mrb[0].mxu0
        %1234 = vdwg.mxu0
        %v1235 = vadd.f32 %v1087, %v1173
        %v1236 = vadd.f32 %v1088, %v1176
        %v1237 = vadd.f32 %v1089, %v1181
        %v1238 = vadd.f32 %v1090, %v1184
        %v1239 = vadd.f32 %v1091, %v1189
        %v1240 = vadd.f32 %v1092, %v1192
        %v1241 = vadd.f32 %v1093, %v1197
        %v1242 = vadd.f32 %v1094, %v1200
        %v1243 = vadd.f32 %v1095, %v1205
        %v1244 = vadd.f32 %v1096, %v1208
        %v1245 = vadd.f32 %v1097, %v1213
        %v1246 = vadd.f32 %v1098, %v1216
        %v1247 = vadd.f32 %v1099, %v1221
        %v1248 = vadd.f32 %v1100, %v1224
        %v1249 = vadd.f32 %v1101, %v1229
        %v1250 = vadd.f32 %v1102, %v1232
        %v1252 = vrot.slane %v226, 5
        %v1253 = vrot.slane %v1252, 4
        %v1254 = vrot.slane %v227, 5
        %v1255 = vsel %vm754, %v1253, %v1254
        %v1256 = vrot.slane %v1254, 4
        %v1257 = vrot.slane %v228, 5
        %v1258 = vsel %vm754, %v1256, %v1257
        %s1259 = scalar_lea.vmem %s1, 10
        %v1260 = vld [vmem:[%s1259] sm:$0x3]
        %v1261 = vunpack.c.l.b16 %v1255
        %v1262 = vunpack.c.l.b16 %v1258
        %v1263 = vpack.c.b16 %v1262, %v1261
        %v1265 = vsel %vm454, %v1263, 0
        %v1268 = vsel %vm479, %v1260, 0
        %1270 = vmatprep.subr.bf16.mxu0 0
        %1271 = vmatpush1.bf16.msra.mxu0 %v1268
        %1272 = vmatprep.subr.bf16.mxu0 0
        %1273 = vmatpush1.bf16.msra.mxu0 0
        %1274 = vmatprep.subr.bf16.mxu0 0
        %1275 = vmatpush1.bf16.msra.mxu0 0
        %1276 = vmatprep.subr.bf16.mxu0 0
        %1277 = vmatpush1.bf16.msra.mxu0 0
        %1278 = vmatprep.subr.bf16.mxu0 0
        %1279 = vmatpush1.bf16.msra.mxu0 0
        %1280 = vmatprep.subr.bf16.mxu0 0
        %1281 = vmatpush1.bf16.msra.mxu0 0
        %1282 = vmatprep.subr.bf16.mxu0 0
        %1283 = vmatpush1.bf16.msra.mxu0 0
        %1284 = vmatprep.subr.bf16.mxu0 0
        %1285 = vmatpush1.bf16.msra.mxu0 0
        %1286 = vmatprep.subr.bf16.mxu0 0
        %1287 = vmatpush1.bf16.msra.mxu0 0
        %1288 = vmatprep.subr.bf16.mxu0 0
        %1289 = vmatpush1.bf16.msra.mxu0 0
        %1290 = vmatprep.subr.bf16.mxu0 0
        %1291 = vmatpush1.bf16.msra.mxu0 0
        %1292 = vmatprep.subr.bf16.mxu0 0
        %1293 = vmatpush1.bf16.msra.mxu0 0
        %1294 = vmatprep.subr.bf16.mxu0 0
        %1295 = vmatpush1.bf16.msra.mxu0 0
        %1296 = vmatprep.subr.bf16.mxu0 0
        %1297 = vmatpush1.bf16.msra.mxu0 0
        %1298 = vmatprep.subr.bf16.mxu0 0
        %1299 = vmatpush1.bf16.msra.mxu0 0
        %1300 = vmatprep.subr.bf16.mxu0 0
        %1301 = vmatpush1.bf16.msra.mxu0 0
        %1302 = vmatprep.mubr.bf16.mxu0 0
        %1303 = vmatmul.mubr.bf16.gmra.mrb[0].mxu0 %v841
        %v1304 = vpop.f32.mrb[0].mxu0
        %v1305 = vadd.f32 0.0, %v1304
        %v1306 = vpop.f32.mrb[0].mxu0
        %v1307 = vpop.f32.mrb[0].mxu0
        %v1308 = vadd.f32 0.0, %v1307
        %v1309 = vpop.f32.mrb[0].mxu0
        %1310 = vmatprep.mubr.bf16.mxu0 0
        %1311 = vmatmul.mubr.bf16.gmra.mrb[0].mxu0 %v844
        %v1312 = vpop.f32.mrb[0].mxu0
        %v1313 = vadd.f32 0.0, %v1312
        %v1314 = vpop.f32.mrb[0].mxu0
        %v1315 = vpop.f32.mrb[0].mxu0
        %v1316 = vadd.f32 0.0, %v1315
        %v1317 = vpop.f32.mrb[0].mxu0
        %1318 = vmatprep.mubr.bf16.mxu0 0
        %1319 = vmatmul.mubr.bf16.gmra.mrb[0].mxu0 %v847
        %v1320 = vpop.f32.mrb[0].mxu0
        %v1321 = vadd.f32 0.0, %v1320
        %v1322 = vpop.f32.mrb[0].mxu0
        %v1323 = vpop.f32.mrb[0].mxu0
        %v1324 = vadd.f32 0.0, %v1323
        %v1325 = vpop.f32.mrb[0].mxu0
        %1326 = vmatprep.mubr.bf16.mxu0 0
        %1327 = vmatmul.mubr.bf16.gmra.mrb[0].mxu0 %v850
        %v1328 = vpop.f32.mrb[0].mxu0
        %v1329 = vadd.f32 0.0, %v1328
        %v1330 = vpop.f32.mrb[0].mxu0
        %v1331 = vpop.f32.mrb[0].mxu0
        %v1332 = vadd.f32 0.0, %v1331
        %v1333 = vpop.f32.mrb[0].mxu0
        %1334 = vmatprep.mubr.bf16.mxu0 0
        %1335 = vmatmul.mubr.bf16.gmra.mrb[0].mxu0 %v853
        %v1336 = vpop.f32.mrb[0].mxu0
        %v1337 = vadd.f32 0.0, %v1336
        %v1338 = vpop.f32.mrb[0].mxu0
        %v1339 = vpop.f32.mrb[0].mxu0
        %v1340 = vadd.f32 0.0, %v1339
        %v1341 = vpop.f32.mrb[0].mxu0
        %1342 = vmatprep.mubr.bf16.mxu0 0
        %1343 = vmatmul.mubr.bf16.gmra.mrb[0].mxu0 %v856
        %v1344 = vpop.f32.mrb[0].mxu0
        %v1345 = vadd.f32 0.0, %v1344
        %v1346 = vpop.f32.mrb[0].mxu0
        %v1347 = vpop.f32.mrb[0].mxu0
        %v1348 = vadd.f32 0.0, %v1347
        %v1349 = vpop.f32.mrb[0].mxu0
        %1350 = vmatprep.mubr.bf16.mxu0 0
        %1351 = vmatmul.mubr.bf16.gmra.mrb[0].mxu0 %v859
        %v1352 = vpop.f32.mrb[0].mxu0
        %v1353 = vadd.f32 0.0, %v1352
        %v1354 = vpop.f32.mrb[0].mxu0
        %v1355 = vpop.f32.mrb[0].mxu0
        %v1356 = vadd.f32 0.0, %v1355
        %v1357 = vpop.f32.mrb[0].mxu0
        %1358 = vmatprep.mubr.bf16.mxu0 0
        %1359 = vmatmul.mubr.bf16.gmra.mrb[0].mxu0 %v1265
        %v1360 = vpop.f32.mrb[0].mxu0
        %v1361 = vadd.f32 0.0, %v1360
        %v1362 = vpop.f32.mrb[0].mxu0
        %v1363 = vpop.f32.mrb[0].mxu0
        %v1364 = vadd.f32 0.0, %v1363
        %v1365 = vpop.f32.mrb[0].mxu0
        %1366 = vdwg.mxu0
        %v1367 = vadd.f32 %v1235, %v1305
        %v1368 = vadd.f32 %v1236, %v1308
        %v1369 = vadd.f32 %v1237, %v1313
        %v1370 = vadd.f32 %v1238, %v1316
        %v1371 = vadd.f32 %v1239, %v1321
        %v1372 = vadd.f32 %v1240, %v1324
        %v1373 = vadd.f32 %v1241, %v1329
        %v1374 = vadd.f32 %v1242, %v1332
        %v1375 = vadd.f32 %v1243, %v1337
        %v1376 = vadd.f32 %v1244, %v1340
        %v1377 = vadd.f32 %v1245, %v1345
        %v1378 = vadd.f32 %v1246, %v1348
        %v1379 = vadd.f32 %v1247, %v1353
        %v1380 = vadd.f32 %v1248, %v1356
        %v1381 = vadd.f32 %v1249, %v1361
        %v1382 = vadd.f32 %v1250, %v1364
        %s1383 = scalar_lea.vmem %s1, 12
        %v1384 = vld [vmem:[%s1383] sm:$0x3]
        %v1387 = vunpack.c.l.b16 %v229
        %v1388 = vunpack.c.l.b16 %v230
        %v1389 = vpack.c.b16 %v1388, %v1387
        %v1391 = vsel %vm454, %v1389, 0
        %v1394 = vsel %vm479, %v1384, 0
        %1396 = vmatprep.subr.bf16.mxu0 0
        %1397 = vmatpush1.bf16.msra.mxu0 %v1394
        %1398 = vmatprep.subr.bf16.mxu0 0
        %1399 = vmatpush1.bf16.msra.mxu0 0
        %1400 = vmatprep.subr.bf16.mxu0 0
        %1401 = vmatpush1.bf16.msra.mxu0 0
        %1402 = vmatprep.subr.bf16.mxu0 0
        %1403 = vmatpush1.bf16.msra.mxu0 0
        %1404 = vmatprep.subr.bf16.mxu0 0
        %1405 = vmatpush1.bf16.msra.mxu0 0
        %1406 = vmatprep.subr.bf16.mxu0 0
        %1407 = vmatpush1.bf16.msra.mxu0 0
        %1408 = vmatprep.subr.bf16.mxu0 0
        %1409 = vmatpush1.bf16.msra.mxu0 0
        %1410 = vmatprep.subr.bf16.mxu0 0
        %1411 = vmatpush1.bf16.msra.mxu0 0
        %1412 = vmatprep.subr.bf16.mxu0 0
        %1413 = vmatpush1.bf16.msra.mxu0 0
        %1414 = vmatprep.subr.bf16.mxu0 0
        %1415 = vmatpush1.bf16.msra.mxu0 0
        %1416 = vmatprep.subr.bf16.mxu0 0
        %1417 = vmatpush1.bf16.msra.mxu0 0
        %1418 = vmatprep.subr.bf16.mxu0 0
        %1419 = vmatpush1.bf16.msra.mxu0 0
        %1420 = vmatprep.subr.bf16.mxu0 0
        %1421 = vmatpush1.bf16.msra.mxu0 0
        %1422 = vmatprep.subr.bf16.mxu0 0
        %1423 = vmatpush1.bf16.msra.mxu0 0
        %1424 = vmatprep.subr.bf16.mxu0 0
        %1425 = vmatpush1.bf16.msra.mxu0 0
        %1426 = vmatprep.subr.bf16.mxu0 0
        %1427 = vmatpush1.bf16.msra.mxu0 0
        %1428 = vmatprep.mubr.bf16.mxu0 0
        %1429 = vmatmul.mubr.bf16.gmra.mrb[0].mxu0 %v627
        %v1430 = vpop.f32.mrb[0].mxu0
        %v1431 = vadd.f32 0.0, %v1430
        %v1432 = vpop.f32.mrb[0].mxu0
        %v1433 = vpop.f32.mrb[0].mxu0
        %v1434 = vadd.f32 0.0, %v1433
        %v1435 = vpop.f32.mrb[0].mxu0
        %1436 = vmatprep.mubr.bf16.mxu0 0
        %1437 = vmatmul.mubr.bf16.gmra.mrb[0].mxu0 %v630
        %v1438 = vpop.f32.mrb[0].mxu0
        %v1439 = vadd.f32 0.0, %v1438
        %v1440 = vpop.f32.mrb[0].mxu0
        %v1441 = vpop.f32.mrb[0].mxu0
        %v1442 = vadd.f32 0.0, %v1441
        %v1443 = vpop.f32.mrb[0].mxu0
        %1444 = vmatprep.mubr.bf16.mxu0 0
        %1445 = vmatmul.mubr.bf16.gmra.mrb[0].mxu0 %v633
        %v1446 = vpop.f32.mrb[0].mxu0
        %v1447 = vadd.f32 0.0, %v1446
        %v1448 = vpop.f32.mrb[0].mxu0
        %v1449 = vpop.f32.mrb[0].mxu0
        %v1450 = vadd.f32 0.0, %v1449
        %v1451 = vpop.f32.mrb[0].mxu0
        %1452 = vmatprep.mubr.bf16.mxu0 0
        %1453 = vmatmul.mubr.bf16.gmra.mrb[0].mxu0 %v636
        %v1454 = vpop.f32.mrb[0].mxu0
        %v1455 = vadd.f32 0.0, %v1454
        %v1456 = vpop.f32.mrb[0].mxu0
        %v1457 = vpop.f32.mrb[0].mxu0
        %v1458 = vadd.f32 0.0, %v1457
        %v1459 = vpop.f32.mrb[0].mxu0
        %1460 = vmatprep.mubr.bf16.mxu0 0
        %1461 = vmatmul.mubr.bf16.gmra.mrb[0].mxu0 %v639
        %v1462 = vpop.f32.mrb[0].mxu0
        %v1463 = vadd.f32 0.0, %v1462
        %v1464 = vpop.f32.mrb[0].mxu0
        %v1465 = vpop.f32.mrb[0].mxu0
        %v1466 = vadd.f32 0.0, %v1465
        %v1467 = vpop.f32.mrb[0].mxu0
        %1468 = vmatprep.mubr.bf16.mxu0 0
        %1469 = vmatmul.mubr.bf16.gmra.mrb[0].mxu0 %v642
        %v1470 = vpop.f32.mrb[0].mxu0
        %v1471 = vadd.f32 0.0, %v1470
        %v1472 = vpop.f32.mrb[0].mxu0
        %v1473 = vpop.f32.mrb[0].mxu0
        %v1474 = vadd.f32 0.0, %v1473
        %v1475 = vpop.f32.mrb[0].mxu0
        %1476 = vmatprep.mubr.bf16.mxu0 0
        %1477 = vmatmul.mubr.bf16.gmra.mrb[0].mxu0 %v985
        %v1478 = vpop.f32.mrb[0].mxu0
        %v1479 = vadd.f32 0.0, %v1478
        %v1480 = vpop.f32.mrb[0].mxu0
        %v1481 = vpop.f32.mrb[0].mxu0
        %v1482 = vadd.f32 0.0, %v1481
        %v1483 = vpop.f32.mrb[0].mxu0
        %1484 = vmatprep.mubr.bf16.mxu0 0
        %1485 = vmatmul.mubr.bf16.gmra.mrb[0].mxu0 %v1391
        %v1486 = vpop.f32.mrb[0].mxu0
        %v1487 = vadd.f32 0.0, %v1486
        %v1488 = vpop.f32.mrb[0].mxu0
        %v1489 = vpop.f32.mrb[0].mxu0
        %v1490 = vadd.f32 0.0, %v1489
        %v1491 = vpop.f32.mrb[0].mxu0
        %1492 = vdwg.mxu0
        %v1493 = vadd.f32 %v1367, %v1431
        %v1494 = vadd.f32 %v1368, %v1434
        %v1495 = vadd.f32 %v1369, %v1439
        %v1496 = vadd.f32 %v1370, %v1442
        %v1497 = vadd.f32 %v1371, %v1447
        %v1498 = vadd.f32 %v1372, %v1450
        %v1499 = vadd.f32 %v1373, %v1455
        %v1500 = vadd.f32 %v1374, %v1458
        %v1501 = vadd.f32 %v1375, %v1463
        %v1502 = vadd.f32 %v1376, %v1466
        %v1503 = vadd.f32 %v1377, %v1471
        %v1504 = vadd.f32 %v1378, %v1474
        %v1505 = vadd.f32 %v1379, %v1479
        %v1506 = vadd.f32 %v1380, %v1482
        %v1507 = vadd.f32 %v1381, %v1487
        %v1508 = vadd.f32 %v1382, %v1490
        %v1510 = vshrl.u32 %v229, 16
        %v1512 = vrot.slane %v1510, 4
        %v1513 = vshll.u32 %v229, 16
        %v1515 = vrot.slane %v1513, 5
        %v1516 = vor.u32 %v1512, %v1515
        %v1517 = vrot.slane %v1516, 4
        %v1519 = vshll.u32 %v230, 16
        %v1521 = vrot.slane %v1519, 5
        %v1522 = vsel %vm235, %v1517, %v1521
        %v1523 = vshrl.u32 %v230, 16
        %v1525 = vrot.slane %v1523, 4
        %v1526 = vor.u32 %v1525, %v1521
        %v1527 = vrot.slane %v1526, 4
        %v1529 = vshll.u32 %v231, 16
        %v1531 = vrot.slane %v1529, 5
        %v1532 = vsel %vm235, %v1527, %v1531
        %s1533 = scalar_lea.vmem %s1, 14
        %v1534 = vld [vmem:[%s1533] sm:$0x3]
        %v1535 = vunpack.c.l.b16 %v1522
        %v1536 = vunpack.c.l.b16 %v1532
        %v1537 = vpack.c.b16 %v1536, %v1535
        %v1539 = vsel %vm454, %v1537, 0
        %v1542 = vsel %vm479, %v1534, 0
        %1544 = vmatprep.subr.bf16.mxu0 0
        %1545 = vmatpush1.bf16.msra.mxu0 %v1542
        %1546 = vmatprep.subr.bf16.mxu0 0
        %1547 = vmatpush1.bf16.msra.mxu0 0
        %1548 = vmatprep.subr.bf16.mxu0 0
        %1549 = vmatpush1.bf16.msra.mxu0 0
        %1550 = vmatprep.subr.bf16.mxu0 0
        %1551 = vmatpush1.bf16.msra.mxu0 0
        %1552 = vmatprep.subr.bf16.mxu0 0
        %1553 = vmatpush1.bf16.msra.mxu0 0
        %1554 = vmatprep.subr.bf16.mxu0 0
        %1555 = vmatpush1.bf16.msra.mxu0 0
        %1556 = vmatprep.subr.bf16.mxu0 0
        %1557 = vmatpush1.bf16.msra.mxu0 0
        %1558 = vmatprep.subr.bf16.mxu0 0
        %1559 = vmatpush1.bf16.msra.mxu0 0
        %1560 = vmatprep.subr.bf16.mxu0 0
        %1561 = vmatpush1.bf16.msra.mxu0 0
        %1562 = vmatprep.subr.bf16.mxu0 0
        %1563 = vmatpush1.bf16.msra.mxu0 0
        %1564 = vmatprep.subr.bf16.mxu0 0
        %1565 = vmatpush1.bf16.msra.mxu0 0
        %1566 = vmatprep.subr.bf16.mxu0 0
        %1567 = vmatpush1.bf16.msra.mxu0 0
        %1568 = vmatprep.subr.bf16.mxu0 0
        %1569 = vmatpush1.bf16.msra.mxu0 0
        %1570 = vmatprep.subr.bf16.mxu0 0
        %1571 = vmatpush1.bf16.msra.mxu0 0
        %1572 = vmatprep.subr.bf16.mxu0 0
        %1573 = vmatpush1.bf16.msra.mxu0 0
        %1574 = vmatprep.subr.bf16.mxu0 0
        %1575 = vmatpush1.bf16.msra.mxu0 0
        %1576 = vmatprep.mubr.bf16.mxu0 0
        %1577 = vmatmul.mubr.bf16.gmra.mrb[0].mxu0 %v462
        %v1578 = vpop.f32.mrb[0].mxu0
        %v1579 = vadd.f32 0.0, %v1578
        %v1580 = vpop.f32.mrb[0].mxu0
        %v1581 = vpop.f32.mrb[0].mxu0
        %v1582 = vadd.f32 0.0, %v1581
        %v1583 = vpop.f32.mrb[0].mxu0
        %1584 = vmatprep.mubr.bf16.mxu0 0
        %1585 = vmatmul.mubr.bf16.gmra.mrb[0].mxu0 %v465
        %v1586 = vpop.f32.mrb[0].mxu0
        %v1587 = vadd.f32 0.0, %v1586
        %v1588 = vpop.f32.mrb[0].mxu0
        %v1589 = vpop.f32.mrb[0].mxu0
        %v1590 = vadd.f32 0.0, %v1589
        %v1591 = vpop.f32.mrb[0].mxu0
        %1592 = vmatprep.mubr.bf16.mxu0 0
        %1593 = vmatmul.mubr.bf16.gmra.mrb[0].mxu0 %v468
        %v1594 = vpop.f32.mrb[0].mxu0
        %v1595 = vadd.f32 0.0, %v1594
        %v1596 = vpop.f32.mrb[0].mxu0
        %v1597 = vpop.f32.mrb[0].mxu0
        %v1598 = vadd.f32 0.0, %v1597
        %v1599 = vpop.f32.mrb[0].mxu0
        %1600 = vmatprep.mubr.bf16.mxu0 0
        %1601 = vmatmul.mubr.bf16.gmra.mrb[0].mxu0 %v471
        %v1602 = vpop.f32.mrb[0].mxu0
        %v1603 = vadd.f32 0.0, %v1602
        %v1604 = vpop.f32.mrb[0].mxu0
        %v1605 = vpop.f32.mrb[0].mxu0
        %v1606 = vadd.f32 0.0, %v1605
        %v1607 = vpop.f32.mrb[0].mxu0
        %1608 = vmatprep.mubr.bf16.mxu0 0
        %1609 = vmatmul.mubr.bf16.gmra.mrb[0].mxu0 %v474
        %v1610 = vpop.f32.mrb[0].mxu0
        %v1611 = vadd.f32 0.0, %v1610
        %v1612 = vpop.f32.mrb[0].mxu0
        %v1613 = vpop.f32.mrb[0].mxu0
        %v1614 = vadd.f32 0.0, %v1613
        %v1615 = vpop.f32.mrb[0].mxu0
        %1616 = vmatprep.mubr.bf16.mxu0 0
        %1617 = vmatmul.mubr.bf16.gmra.mrb[0].mxu0 %v477
        %v1618 = vpop.f32.mrb[0].mxu0
        %v1619 = vadd.f32 0.0, %v1618
        %v1620 = vpop.f32.mrb[0].mxu0
        %v1621 = vpop.f32.mrb[0].mxu0
        %v1622 = vadd.f32 0.0, %v1621
        %v1623 = vpop.f32.mrb[0].mxu0
        %1624 = vmatprep.mubr.bf16.mxu0 0
        %1625 = vmatmul.mubr.bf16.gmra.mrb[0].mxu0 %v1133
        %v1626 = vpop.f32.mrb[0].mxu0
        %v1627 = vadd.f32 0.0, %v1626
        %v1628 = vpop.f32.mrb[0].mxu0
        %v1629 = vpop.f32.mrb[0].mxu0
        %v1630 = vadd.f32 0.0, %v1629
        %v1631 = vpop.f32.mrb[0].mxu0
        %1632 = vmatprep.mubr.bf16.mxu0 0
        %1633 = vmatmul.mubr.bf16.gmra.mrb[0].mxu0 %v1539
        %v1634 = vpop.f32.mrb[0].mxu0
        %v1635 = vadd.f32 0.0, %v1634
        %v1636 = vpop.f32.mrb[0].mxu0
        %v1637 = vpop.f32.mrb[0].mxu0
        %v1638 = vadd.f32 0.0, %v1637
        %v1639 = vpop.f32.mrb[0].mxu0
        %1640 = vdwg.mxu0
        %v1641 = vadd.f32 %v1493, %v1579
        %v1642 = vadd.f32 %v1494, %v1582
        %v1643 = vadd.f32 %v1495, %v1587
        %v1644 = vadd.f32 %v1496, %v1590
        %v1645 = vadd.f32 %v1497, %v1595
        %v1646 = vadd.f32 %v1498, %v1598
        %v1647 = vadd.f32 %v1499, %v1603
        %v1648 = vadd.f32 %v1500, %v1606
        %v1649 = vadd.f32 %v1501, %v1611
        %v1650 = vadd.f32 %v1502, %v1614
        %v1651 = vadd.f32 %v1503, %v1619
        %v1652 = vadd.f32 %v1504, %v1622
        %v1653 = vadd.f32 %v1505, %v1627
        %v1654 = vadd.f32 %v1506, %v1630
        %v1655 = vadd.f32 %v1507, %v1635
        %v1656 = vadd.f32 %v1508, %v1638
        %v1658 = vrot.slane %v229, 5
        %v1659 = vrot.slane %v1658, 4
        %v1660 = vrot.slane %v230, 5
        %v1661 = vsel %vm754, %v1659, %v1660
        %v1662 = vrot.slane %v1660, 4
        %v1663 = vrot.slane %v231, 5
        %v1664 = vsel %vm754, %v1662, %v1663
        %s1665 = scalar_lea.vmem %s1, 16
        %v1666 = vld [vmem:[%s1665] sm:$0x3]
        %v1667 = vunpack.c.l.b16 %v1661
        %v1668 = vunpack.c.l.b16 %v1664
        %v1669 = vpack.c.b16 %v1668, %v1667
        %v1671 = vsel %vm454, %v1669, 0
        %v1674 = vsel %vm479, %v1666, 0
        %1676 = vmatprep.subr.bf16.mxu0 0
        %1677 = vmatpush1.bf16.msra.mxu0 %v1674
        %1678 = vmatprep.subr.bf16.mxu0 0
        %1679 = vmatpush1.bf16.msra.mxu0 0
        %1680 = vmatprep.subr.bf16.mxu0 0
        %1681 = vmatpush1.bf16.msra.mxu0 0
        %1682 = vmatprep.subr.bf16.mxu0 0
        %1683 = vmatpush1.bf16.msra.mxu0 0
        %1684 = vmatprep.subr.bf16.mxu0 0
        %1685 = vmatpush1.bf16.msra.mxu0 0
        %1686 = vmatprep.subr.bf16.mxu0 0
        %1687 = vmatpush1.bf16.msra.mxu0 0
        %1688 = vmatprep.subr.bf16.mxu0 0
        %1689 = vmatpush1.bf16.msra.mxu0 0
        %1690 = vmatprep.subr.bf16.mxu0 0
        %1691 = vmatpush1.bf16.msra.mxu0 0
        %1692 = vmatprep.subr.bf16.mxu0 0
        %1693 = vmatpush1.bf16.msra.mxu0 0
        %1694 = vmatprep.subr.bf16.mxu0 0
        %1695 = vmatpush1.bf16.msra.mxu0 0
        %1696 = vmatprep.subr.bf16.mxu0 0
        %1697 = vmatpush1.bf16.msra.mxu0 0
        %1698 = vmatprep.subr.bf16.mxu0 0
        %1699 = vmatpush1.bf16.msra.mxu0 0
        %1700 = vmatprep.subr.bf16.mxu0 0
        %1701 = vmatpush1.bf16.msra.mxu0 0
        %1702 = vmatprep.subr.bf16.mxu0 0
        %1703 = vmatpush1.bf16.msra.mxu0 0
        %1704 = vmatprep.subr.bf16.mxu0 0
        %1705 = vmatpush1.bf16.msra.mxu0 0
        %1706 = vmatprep.subr.bf16.mxu0 0
        %1707 = vmatpush1.bf16.msra.mxu0 0
        %1708 = vmatprep.mubr.bf16.mxu0 0
        %1709 = vmatmul.mubr.bf16.gmra.mrb[0].mxu0 %v844
        %v1710 = vpop.f32.mrb[0].mxu0
        %v1711 = vadd.f32 0.0, %v1710
        %v1712 = vpop.f32.mrb[0].mxu0
        %v1713 = vpop.f32.mrb[0].mxu0
        %v1714 = vadd.f32 0.0, %v1713
        %v1715 = vpop.f32.mrb[0].mxu0
        %1716 = vmatprep.mubr.bf16.mxu0 0
        %1717 = vmatmul.mubr.bf16.gmra.mrb[0].mxu0 %v847
        %v1718 = vpop.f32.mrb[0].mxu0
        %v1719 = vadd.f32 0.0, %v1718
        %v1720 = vpop.f32.mrb[0].mxu0
        %v1721 = vpop.f32.mrb[0].mxu0
        %v1722 = vadd.f32 0.0, %v1721
        %v1723 = vpop.f32.mrb[0].mxu0
        %1724 = vmatprep.mubr.bf16.mxu0 0
        %1725 = vmatmul.mubr.bf16.gmra.mrb[0].mxu0 %v850
        %v1726 = vpop.f32.mrb[0].mxu0
        %v1727 = vadd.f32 0.0, %v1726
        %v1728 = vpop.f32.mrb[0].mxu0
        %v1729 = vpop.f32.mrb[0].mxu0
        %v1730 = vadd.f32 0.0, %v1729
        %v1731 = vpop.f32.mrb[0].mxu0
        %1732 = vmatprep.mubr.bf16.mxu0 0
        %1733 = vmatmul.mubr.bf16.gmra.mrb[0].mxu0 %v853
        %v1734 = vpop.f32.mrb[0].mxu0
        %v1735 = vadd.f32 0.0, %v1734
        %v1736 = vpop.f32.mrb[0].mxu0
        %v1737 = vpop.f32.mrb[0].mxu0
        %v1738 = vadd.f32 0.0, %v1737
        %v1739 = vpop.f32.mrb[0].mxu0
        %1740 = vmatprep.mubr.bf16.mxu0 0
        %1741 = vmatmul.mubr.bf16.gmra.mrb[0].mxu0 %v856
        %v1742 = vpop.f32.mrb[0].mxu0
        %v1743 = vadd.f32 0.0, %v1742
        %v1744 = vpop.f32.mrb[0].mxu0
        %v1745 = vpop.f32.mrb[0].mxu0
        %v1746 = vadd.f32 0.0, %v1745
        %v1747 = vpop.f32.mrb[0].mxu0
        %1748 = vmatprep.mubr.bf16.mxu0 0
        %1749 = vmatmul.mubr.bf16.gmra.mrb[0].mxu0 %v859
        %v1750 = vpop.f32.mrb[0].mxu0
        %v1751 = vadd.f32 0.0, %v1750
        %v1752 = vpop.f32.mrb[0].mxu0
        %v1753 = vpop.f32.mrb[0].mxu0
        %v1754 = vadd.f32 0.0, %v1753
        %v1755 = vpop.f32.mrb[0].mxu0
        %1756 = vmatprep.mubr.bf16.mxu0 0
        %1757 = vmatmul.mubr.bf16.gmra.mrb[0].mxu0 %v1265
        %v1758 = vpop.f32.mrb[0].mxu0
        %v1759 = vadd.f32 0.0, %v1758
        %v1760 = vpop.f32.mrb[0].mxu0
        %v1761 = vpop.f32.mrb[0].mxu0
        %v1762 = vadd.f32 0.0, %v1761
        %v1763 = vpop.f32.mrb[0].mxu0
        %1764 = vmatprep.mubr.bf16.mxu0 0
        %1765 = vmatmul.mubr.bf16.gmra.mrb[0].mxu0 %v1671
        %v1766 = vpop.f32.mrb[0].mxu0
        %v1767 = vadd.f32 0.0, %v1766
        %v1768 = vpop.f32.mrb[0].mxu0
        %v1769 = vpop.f32.mrb[0].mxu0
        %v1770 = vadd.f32 0.0, %v1769
        %v1771 = vpop.f32.mrb[0].mxu0
        %1772 = vdwg.mxu0
        %v1773 = vadd.f32 %v1641, %v1711
        %v1774 = vadd.f32 %v1642, %v1714
        %v1775 = vadd.f32 %v1643, %v1719
        %v1776 = vadd.f32 %v1644, %v1722
        %v1777 = vadd.f32 %v1645, %v1727
        %v1778 = vadd.f32 %v1646, %v1730
        %v1779 = vadd.f32 %v1647, %v1735
        %v1780 = vadd.f32 %v1648, %v1738
        %v1781 = vadd.f32 %v1649, %v1743
        %v1782 = vadd.f32 %v1650, %v1746
        %v1783 = vadd.f32 %v1651, %v1751
        %v1784 = vadd.f32 %v1652, %v1754
        %v1785 = vadd.f32 %v1653, %v1759
        %v1786 = vadd.f32 %v1654, %v1762
        %v1787 = vadd.f32 %v1655, %v1767
        %v1788 = vadd.f32 %v1656, %v1770
        %v1789 = vld [vmem:[%s2] sm:$0x1]
        %v1791 = vlaneseq
        %v1792 = vshrl.u32 %v1791, 7
        %v1793 = vsub.s32 0, %v1792
        %v1794 = vrot.slane %v1789, %v1793
        %v1796 = vadd.f32 %v1773, %v1794
        %v1797 = vadd.f32 %v1774, %v1794
        %v1798 = vadd.f32 %v1775, %v1794
        %v1799 = vadd.f32 %v1776, %v1794
        %v1800 = vadd.f32 %v1777, %v1794
        %v1801 = vadd.f32 %v1778, %v1794
        %v1802 = vadd.f32 %v1779, %v1794
        %v1803 = vadd.f32 %v1780, %v1794
        %v1804 = vadd.f32 %v1781, %v1794
        %v1805 = vadd.f32 %v1782, %v1794
        %v1806 = vadd.f32 %v1783, %v1794
        %v1807 = vadd.f32 %v1784, %v1794
        %v1808 = vadd.f32 %v1785, %v1794
        %v1809 = vadd.f32 %v1786, %v1794
        %v1810 = vadd.f32 %v1787, %v1794
        %v1811 = vadd.f32 %v1788, %v1794
        %v1812 = vld [vmem:[#allocation3] sm:$0x1]
        %v1813 = vadd.f32 %v1796, %v1797
        %v1814 = vadd.f32 %v1813, %v1798
        %v1815 = vadd.f32 %v1814, %v1799
        %v1816 = vadd.f32 %v1815, %v1800
        %v1817 = vadd.f32 %v1816, %v1801
        %v1818 = vadd.f32 %v1817, %v1802
        %v1819 = vadd.f32 %v1818, %v1803
        %v1820 = vadd.f32 %v1819, %v1804
        %v1821 = vadd.f32 %v1820, %v1805
        %v1822 = vadd.f32 %v1821, %v1806
        %v1823 = vadd.f32 %v1822, %v1807
        %v1824 = vadd.f32 %v1823, %v1808
        %v1825 = vadd.f32 %v1824, %v1809
        %v1826 = vadd.f32 %v1825, %v1810
        %v1827 = vadd.f32 %v1826, %v1811
        %v1828 = vrot.slane %v1827, 4
        %v1829 = vadd.f32 %v1827, %v1828
        %v1830 = vrot.slane %v1829, 2
        %v1831 = vadd.f32 %v1829, %v1830
        %v1832 = vrot.slane %v1831, 1
        %v1833 = vadd.f32 %v1831, %v1832
        %v1834 = vadd.f32 %v1812, %v1833
        %1835 = vst [vmem:[#allocation3] sm:$0x1] %v1834
        %v1836 = vld [vmem:[#allocation4] sm:$0x1]
        %v1837 = vmul.f32 %v1796, %v1796
        %v1838 = vmul.f32 %v1797, %v1797
        %v1839 = vmul.f32 %v1798, %v1798
        %v1840 = vmul.f32 %v1799, %v1799
        %v1841 = vmul.f32 %v1800, %v1800
        %v1842 = vmul.f32 %v1801, %v1801
        %v1843 = vmul.f32 %v1802, %v1802
        %v1844 = vmul.f32 %v1803, %v1803
        %v1845 = vmul.f32 %v1804, %v1804
        %v1846 = vmul.f32 %v1805, %v1805
        %v1847 = vmul.f32 %v1806, %v1806
        %v1848 = vmul.f32 %v1807, %v1807
        %v1849 = vmul.f32 %v1808, %v1808
        %v1850 = vmul.f32 %v1809, %v1809
        %v1851 = vmul.f32 %v1810, %v1810
        %v1852 = vmul.f32 %v1811, %v1811
        %v1853 = vadd.f32 %v1837, %v1838
        %v1854 = vadd.f32 %v1853, %v1839
        %v1855 = vadd.f32 %v1854, %v1840
        %v1856 = vadd.f32 %v1855, %v1841
        %v1857 = vadd.f32 %v1856, %v1842
        %v1858 = vadd.f32 %v1857, %v1843
        %v1859 = vadd.f32 %v1858, %v1844
        %v1860 = vadd.f32 %v1859, %v1845
        %v1861 = vadd.f32 %v1860, %v1846
        %v1862 = vadd.f32 %v1861, %v1847
        %v1863 = vadd.f32 %v1862, %v1848
        %v1864 = vadd.f32 %v1863, %v1849
        %v1865 = vadd.f32 %v1864, %v1850
        %v1866 = vadd.f32 %v1865, %v1851
        %v1867 = vadd.f32 %v1866, %v1852
        %v1868 = vrot.slane %v1867, 4
        %v1869 = vadd.f32 %v1867, %v1868
        %v1870 = vrot.slane %v1869, 2
        %v1871 = vadd.f32 %v1869, %v1870
        %v1872 = vrot.slane %v1871, 1
        %v1873 = vadd.f32 %v1871, %v1872
        %v1874 = vadd.f32 %v1836, %v1873
        %1875 = vst [vmem:[#allocation4] sm:$0x1] %v1874
        %v1876 = vmax.f32 %v1796, %v1798
        %v1877 = vmax.f32 %v1797, %v1799
        %v1878 = vmax.f32 %v1800, %v1802
        %v1879 = vmax.f32 %v1801, %v1803
        %v1880 = vmax.f32 %v1804, %v1806
        %v1881 = vmax.f32 %v1805, %v1807
        %v1882 = vmax.f32 %v1808, %v1810
        %v1883 = vmax.f32 %v1809, %v1811
        %1884 = vst [vmem:[#allocation2] sm:$0xff] %v1876
        %1885 = vst [vmem:[#allocation2 + $0x8] sm:$0xff] %v1877
        %1886 = vst [vmem:[#allocation2 + $0x10] sm:$0xff] %v1878
        %1887 = vst [vmem:[#allocation2 + $0x18] sm:$0xff] %v1879
        %1888 = vst [vmem:[#allocation2 + $0x20] sm:$0xff] %v1880
        %1889 = vst [vmem:[#allocation2 + $0x28] sm:$0xff] %v1881
        %1890 = vst [vmem:[#allocation2 + $0x30] sm:$0xff] %v1882
        %1891 = vst [vmem:[#allocation2 + $0x38] sm:$0xff] %v1883
        %v1892 = vld [vmem:[#allocation2] ss:$2 sm:$0xff]
        %s1893 = scalar_lea.vmem [#allocation2], 16
        %v1894 = vld [vmem:[%s1893] ss:$2 sm:$0xff]
        %s1895 = scalar_lea.vmem [#allocation2], 32
        %v1896 = vld [vmem:[%s1895] ss:$2 sm:$0xff]
        %s1897 = scalar_lea.vmem [#allocation2], 48
        %v1898 = vld [vmem:[%s1897] ss:$2 sm:$0xff]
        %s1899 = scalar_lea.vmem [#allocation2], 1
        %v1900 = vld [vmem:[%s1899] ss:$2 sm:$0xff]
        %s1901 = scalar_lea.vmem [#allocation2], 17
        %v1902 = vld [vmem:[%s1901] ss:$2 sm:$0xff]
        %s1903 = scalar_lea.vmem [#allocation2], 33
        %v1904 = vld [vmem:[%s1903] ss:$2 sm:$0xff]
        %s1905 = scalar_lea.vmem [#allocation2], 49
        %v1906 = vld [vmem:[%s1905] ss:$2 sm:$0xff]
        %v1907 = vmax.f32 %v1892, %v1900
        %v1908 = vmax.f32 %v1894, %v1902
        %v1909 = vmax.f32 %v1896, %v1904
        %v1910 = vmax.f32 %v1898, %v1906
        %s1911 = smul.u32 %s22, 4
        %s1912 = smul.u32 %s1911, 8
        %s1913 = scalar_lea.vmem %s185, %s1912 [#allocation5]
        %1914 = vst [vmem:[%s1913] sm:$0xff] %v1907
        %1915 = vst [vmem:[%s1913 + $0x8] sm:$0xff] %v1908
        %1916 = vst [vmem:[%s1913 + $0x10] sm:$0xff] %v1909
        %1917 = vst [vmem:[%s1913 + $0x18] sm:$0xff] %v1910
        %p1918 = scmp.eq.s32.totalorder %s22, 1
        // Predicated region
        $region37: #{tpu_custom_call.1} parent=31 // pred_check
          %p1919 = pneg %p1918
        $region38: #{tpu_custom_call.1} parent=31 // pred_check_branch
          %1921 = sbr.rel (%p1919) target = $region40
        $region39: #{tpu_custom_call.1} parent=31 // pred_region
          %v1922 = vld [vmem:[#allocation3] sm:$0x1]
          %v1923 = vmul.f32 %v1922, 0.00390625
          %v1924 = vld [vmem:[#allocation4] sm:$0x1]
          %v1925 = vmul.f32 %v1924, 0.00390625
          %v1926 = vmul.f32 %v1923, %v1923
          %v1927 = vsub.f32 %v1925, %v1926
          %v1928 = vmax.f32 %v1927, 0.0
          %v1929 = vadd.f32 %v1928, 1e-05
          %v1930 = vrsqrt.pop %v1929
          %v1931 = vld [vmem:[%s185] sm:$0xff]
          %v1932 = vld [vmem:[%s185 + $0x8] sm:$0xff]
          %v1933 = vld [vmem:[%s185 + $0x10] sm:$0xff]
          %v1934 = vld [vmem:[%s185 + $0x18] sm:$0xff]
          %v1935 = vld [vmem:[%s185 + $0x20] sm:$0xff]
          %v1936 = vld [vmem:[%s185 + $0x28] sm:$0xff]
          %v1937 = vld [vmem:[%s185 + $0x30] sm:$0xff]
          %v1938 = vld [vmem:[%s185 + $0x38] sm:$0xff]
          %v1940 = vlaneseq
          %v1941 = vshrl.u32 %v1940, 7
          %v1942 = vsub.s32 0, %v1941
          %v1943 = vrot.slane %v1923, %v1942
          %v1945 = vsub.f32 %v1931, %v1943
          %v1946 = vsub.f32 %v1932, %v1943
          %v1947 = vsub.f32 %v1933, %v1943
          %v1948 = vsub.f32 %v1934, %v1943
          %v1949 = vsub.f32 %v1935, %v1943
          %v1950 = vsub.f32 %v1936, %v1943
          %v1951 = vsub.f32 %v1937, %v1943
          %v1952 = vsub.f32 %v1938, %v1943
          %v1954 = vlaneseq
          %v1955 = vshrl.u32 %v1954, 7
          %v1956 = vsub.s32 0, %v1955
          %v1957 = vrot.slane %v1930, %v1956
          %v1959 = vmul.f32 %v1945, %v1957
          %v1960 = vmul.f32 %v1946, %v1957
          %v1961 = vmul.f32 %v1947, %v1957
          %v1962 = vmul.f32 %v1948, %v1957
          %v1963 = vmul.f32 %v1949, %v1957
          %v1964 = vmul.f32 %v1950, %v1957
          %v1965 = vmul.f32 %v1951, %v1957
          %v1966 = vmul.f32 %v1952, %v1957
          %v1967 = vmax.f32 %v1959, 0.0
          %v1968 = vmax.f32 %v1960, 0.0
          %v1969 = vmax.f32 %v1961, 0.0
          %v1970 = vmax.f32 %v1962, 0.0
          %v1971 = vmax.f32 %v1963, 0.0
          %v1972 = vmax.f32 %v1964, 0.0
          %v1973 = vmax.f32 %v1965, 0.0
          %v1974 = vmax.f32 %v1966, 0.0
          %1975 = vst [vmem:[%s185] sm:$0xff] %v1967
          %1976 = vst [vmem:[%s185 + $0x8] sm:$0xff] %v1968
          %1977 = vst [vmem:[%s185 + $0x10] sm:$0xff] %v1969
          %1978 = vst [vmem:[%s185 + $0x18] sm:$0xff] %v1970
          %1979 = vst [vmem:[%s185 + $0x20] sm:$0xff] %v1971
          %1980 = vst [vmem:[%s185 + $0x28] sm:$0xff] %v1972
          %1981 = vst [vmem:[%s185 + $0x30] sm:$0xff] %v1973
          %1982 = vst [vmem:[%s185 + $0x38] sm:$0xff] %v1974
        $region40: #{tpu_custom_call.1} parent=31 // pred_fallthru
          _
        %s1983 = sand.u32 %s109, 1
        %s1984 = scalar_lea.sflag [#allocation6], %s1983
        %s1985 = sand.u32 %s109, 1
        %s1986 = smul.addr %s1985, 64
        %s1987 = scalar_lea.vmem [#allocation5], %s1986
        // Predicated region
        $region41: #{tpu_custom_call.1} parent=31 // pred_check
          %p1988 = pneg %p119
        $region42: #{tpu_custom_call.1} parent=31 // pred_check_branch
          %1990 = sbr.rel (%p1988) target = $region44
        $region43: #{tpu_custom_call.1} parent=31 // pred_region
          %s1992 = ssub.s32 1024, 1024
          %1993 = vsyncadd %s1984, %s1992
          %s1994 = smul.addr %s21, 8
          %s1995 = smul.addr %s1994, 128
          %s1996 = scalar_lea.hbm %s3, %s1995
          %s1997 = sshll.u32 %s1987, 4
          %s1998 = int_to_ptr.vmem [resolvable:$true] %s1997
          %2003 = dma.vmem_to_hbm [thread:$0]  %s1998, 1024, %s1996, %s1984, 128, 128, 8
        $region44: #{tpu_custom_call.1} parent=31 // pred_fallthru
          _
      $region32: #{tpu_custom_call.1} parent=5 // pred_fallthru
        _
      %p2004 = scmp.le.s32.totalorder 2, %s12
      // Predicated region
      $region45: #{tpu_custom_call.1} parent=5 // pred_check
        %p2005 = pneg %p2004
      $region46: #{tpu_custom_call.1} parent=5 // pred_check_branch
        %2007 = sbr.rel (%p2005) target = $region48
      $region47: #{tpu_custom_call.1} parent=5 // pred_region
        %s2008 = ssub.s32 %s12, 2
        // Predicated region
        $region49: #{tpu_custom_call.1} parent=47 // pred_check
          %p2009 = pneg %p125
        $region50: #{tpu_custom_call.1} parent=47 // pred_check_branch
          %2011 = sbr.rel (%p2009) target = $region52
        $region51: #{tpu_custom_call.1} parent=47 // pred_region
          %s2012 = sand.u32 %s110, 1
          %s2013 = scalar_lea.sflag [#allocation6], %s2012
          %s2014 = sand.u32 %s110, 1
          %s2015 = smul.addr %s2014, 64
          %s2016 = scalar_lea.vmem [#allocation5], %s2015
          %2017 = dma.done %s2013, 1024
        $region52: #{tpu_custom_call.1} parent=47 // pred_fallthru
          _
      $region48: #{tpu_custom_call.1} parent=5 // pred_fallthru
        _
    $region6: #{tpu_custom_call.1} parent=1 // loop_footer
      %s16 = sadd.s32 1, %s12
    $region7: #{tpu_custom_call.1} parent=1 // loop_footer_branch
      %11 = sbr.rel target = $region3
    $region8: #{tpu_custom_call.1} parent=1 // loop_exit
      _
    %2018 = vsyncpa [#allocation6], 1
    %s2019 = scalar_lea.sflag [#allocation6], 1
    %2020 = vsyncpa %s2019, 1

</llo_original>
